<compile_context>
chip_gen: v6e
topology: v6e:2x2x1
jax: 0.10.0
libtpu: 0.0.40
codegen_flags: <defaults>
</compile_context>

<pallas_src>
import functools

import jax
import jax.numpy as jnp
from jax.experimental import pallas as pl
from jax.experimental.pallas import tpu as pltpu


def _round_up(n, m):
    return (n + m - 1) // m * m


# ----------------------------------------------------------------------------
# Fused decoder-layer kernel (one grid step == block_batch batch elements)
# ----------------------------------------------------------------------------
def _decoder_layer_kernel(x_ref, cross_ref, A_ref,
                          sa_wqkv_ref, ca_wkv_ref, w_dd_ref,
                          ffn_w1_ref, ffn_w2_ref, proj_w_ref,
                          x_out_ref, trend_out_ref, *, d_model):
    f32, bf16 = jnp.float32, jnp.bfloat16
    Bb, L, Dp = x_ref.shape                    # block_batch, seq, padded d_model
    S = cross_ref.shape[1]
    M = Bb * L
    Cp = proj_w_ref.shape[-1]
    scale = 1.0 / (d_model ** 0.5)             # scale uses the ORIGINAL d_model

    def mm(a, w):                              # (M,K) f32 x (K,N) bf16 -> (M,N) f32
        return jnp.dot(a.astype(bf16), w, preferred_element_type=f32)

    def sdpa(q, k, v):
        # batched single-head attention; bf16 MXU inputs, f32 accumulate
        s = jnp.einsum('bqd,bkd->bqk', q.astype(bf16), k.astype(bf16),
                       preferred_element_type=f32) * scale
        s = s - jnp.max(s, axis=-1, keepdims=True)
        p = jnp.exp(s)
        p = p * pl.reciprocal(jnp.sum(p, axis=-1, keepdims=True), approx=True)
        return jnp.einsum('bqk,bkd->bqd', p.astype(bf16), v.astype(bf16),
                          preferred_element_type=f32)

    x = x_ref[...].reshape(M, Dp)              # fold batch into the M/sublane dim
    A = A_ref[...]                             # (M, M) block-diag moving-avg matrix, bf16

    # ---- self attention (fused QKV) + residual + series_decomp #1 ----------
    qkv = mm(x, sa_wqkv_ref[...]).reshape(Bb, L, 3 * Dp)
    attn = sdpa(qkv[:, :, :Dp], qkv[:, :, Dp:2 * Dp], qkv[:, :, 2 * Dp:])
    x = x + mm(attn.reshape(M, Dp), w_dd_ref[0])          # w_dd[0] = self Wo
    # TODO(synk): at large L replace the band-matrix matmul with a K-tap
    # roll+add stencil (VPU/XLU) to avoid the (M,M) dense MXU work.
    mean1 = jnp.dot(A, x.astype(bf16), preferred_element_type=f32)
    x = x - mean1
    trend = mean1

    # ---- cross attention (fused KV) + residual + series_decomp #2 ----------
    q = mm(x, w_dd_ref[1]).reshape(Bb, L, Dp)              # w_dd[1] = cross Wq
    kv = mm(cross_ref[...].reshape(Bb * S, Dp), ca_wkv_ref[...]).reshape(Bb, S, 2 * Dp)
    attn = sdpa(q, kv[:, :, :Dp], kv[:, :, Dp:])
    x = x + mm(attn.reshape(M, Dp), w_dd_ref[2])           # w_dd[2] = cross Wo
    mean2 = jnp.dot(A, x.astype(bf16), preferred_element_type=f32)
    x = x - mean2
    trend = trend + mean2

    # ---- FFN (1x1 convs, relu) + residual + series_decomp #3 ---------------
    h = jnp.maximum(mm(x, ffn_w1_ref[...]), 0.0)           # relu kept in f32
    y = mm(h, ffn_w2_ref[...])
    xy = x + y
    mean3 = jnp.dot(A, xy.astype(bf16), preferred_element_type=f32)
    x = xy - mean3
    trend = trend + mean3

    # ---- circular k=3 projection of summed trend ----------------------------
    # shifts via pltpu.roll (XLU), taps fused into a single (3*Dp, Cp) matmul
    trend3 = trend.reshape(Bb, L, Dp)
    rows = []
    for b in range(Bb):                        # Bb is a small static int -> unrolled
        tb = trend3[b]                                         # (L, Dp)
        t_prev = pltpu.roll(tb, 1, axis=0)                     # tb[(t-1) % L]
        t_next = pltpu.roll(tb, L - 1, axis=0)                 # tb[(t+1) % L]
        rows.append(jnp.concatenate([t_prev, tb, t_next], axis=-1))
    cat = jnp.concatenate(rows, axis=0)                        # (M, 3*Dp)
    out = jnp.dot(cat.astype(bf16), proj_w_ref[...], preferred_element_type=f32)

    # lane-dense (Dp / Cp are multiples of 128) unmasked stores
    x_out_ref[...] = x.reshape(Bb, L, Dp)
    trend_out_ref[...] = out.reshape(Bb, L, Cp)


# ----------------------------------------------------------------------------
# Host-side constant matrix (constant-folded by XLA under jit)
# ----------------------------------------------------------------------------
def _moving_avg_matrix(L, K):
    # mean[t] = (1/K) * sum_k x[clip(t - pad + k, 0, L-1)]   (replicate padding)
    pad = (K - 1) // 2
    rows = jnp.arange(L)[:, None]
    idx = jnp.clip(rows + jnp.arange(K)[None, :] - pad, 0, L - 1)      # (L, K)
    A = jnp.zeros((L, L), jnp.float32)
    return A.at[jnp.broadcast_to(rows, (L, K)), idx].add(1.0 / K)


# ----------------------------------------------------------------------------
# DecoderLayer forward (single pallas_call)
# ----------------------------------------------------------------------------
def decoder_layer_forward(packed, x, cross, *, d_model, c_out, moving_avg,
                          block_batch=None):
    B, L, D = x.shape
    S = cross.shape[1]
    assert D == d_model
    # TODO(synk): even moving_avg needs asymmetric padding; Autoformer uses odd.
    assert moving_avg % 2 == 1, "series_decomp implemented for odd moving_avg only"

    Dp = packed["w_dd"].shape[-1]          # padded d_model  (multiple of 128)
    Fp = packed["ffn_w1"].shape[-1]        # padded d_ff
    Cp = packed["proj_w"].shape[-1]        # padded c_out

    if block_batch is None:
        # pack batch rows up to ~256 per grid step to fill the MXU M dimension
        target = max(1, 256 // L)
        block_batch = max(d for d in range(1, B + 1) if B % d == 0 and d <= target)
    assert B % block_batch == 0
    Bb = block_batch
    M = Bb * L
    # NOTE(v7x): prefer a block_batch keeping (B // Bb) a multiple of 2 so both
    # TensorCores share the parallel grid axis.

    x_pad = jnp.pad(x.astype(jnp.float32), ((0, 0), (0, 0), (0, Dp - D)))
    cross_pad = jnp.pad(cross.astype(jnp.float32), ((0, 0), (0, 0), (0, Dp - D)))

    # block-diagonal moving-average band matrix -> single 2-D matmul per decomp
    A = _moving_avg_matrix(L, moving_avg)
    A_block = jnp.kron(jnp.eye(Bb, dtype=jnp.float32), A).astype(jnp.bfloat16)

    # TODO(synk): at realistic Autoformer sizes (d_model~512, d_ff~2048) on v7x,
    # add pipeline_mode=pl.Buffered(1) to the grid-invariant weight specs and
    # set pltpu.CompilerParams(vmem_limit_bytes=...) to stay inside 64 MiB VMEM.
    out_x, out_trend = pl.pallas_call(
        functools.partial(_decoder_layer_kernel, d_model=d_model),
        out_shape=(jax.ShapeDtypeStruct((B, L, Dp), jnp.float32),
                   jax.ShapeDtypeStruct((B, L, Cp), jnp.float32)),
        grid=(B // Bb,),
        in_specs=[
            pl.BlockSpec((Bb, L, Dp), lambda b: (b, 0, 0)),    # x
            pl.BlockSpec((Bb, S, Dp), lambda b: (b, 0, 0)),    # cross
            pl.BlockSpec((M, M), lambda b: (0, 0)),            # decomp band matrix
            pl.BlockSpec((Dp, 3 * Dp), lambda b: (0, 0)),      # Wq|Wk|Wv (self)
            pl.BlockSpec((Dp, 2 * Dp), lambda b: (0, 0)),      # Wk|Wv (cross)
            pl.BlockSpec((3, Dp, Dp), lambda b: (0, 0, 0)),    # [self Wo, cross Wq, cross Wo]
            pl.BlockSpec((Dp, Fp), lambda b: (0, 0)),          # conv1 (1x1)
            pl.BlockSpec((Fp, Dp), lambda b: (0, 0)),          # conv2 (1x1)
            pl.BlockSpec((3 * Dp, Cp), lambda b: (0, 0)),      # fused k=3 projection
        ],
        out_specs=(pl.BlockSpec((Bb, L, Dp), lambda b: (b, 0, 0)),
                   pl.BlockSpec((Bb, L, Cp), lambda b: (b, 0, 0))),
        compiler_params=pltpu.CompilerParams(dimension_semantics=("parallel",)),
    )(x_pad, cross_pad, A_block,
      packed["sa_wqkv"], packed["ca_wkv"], packed["w_dd"],
      packed["ffn_w1"], packed["ffn_w2"], packed["proj_w"])

    return out_x[:, :, :d_model], out_trend[:, :, :c_out]


# ----------------------------------------------------------------------------
# Parameters: raw (f32, PyTorch-equivalent matmul layouts) and packed (bf16,
# lane-padded, fused) versions.
# ----------------------------------------------------------------------------
def init_params(key, d_model, d_ff, c_out):
    keys = jax.random.split(key, 11)
    n = lambda k, s: (0.05 * jax.random.normal(k, s)).astype(jnp.float32)
    return dict(
        sa_wq=n(keys[0], (d_model, d_model)), sa_wk=n(keys[1], (d_model, d_model)),
        sa_wv=n(keys[2], (d_model, d_model)), sa_wo=n(keys[3], (d_model, d_model)),
        ca_wq=n(keys[4], (d_model, d_model)), ca_wk=n(keys[5], (d_model, d_model)),
        ca_wv=n(keys[6], (d_model, d_model)), ca_wo=n(keys[7], (d_model, d_model)),
        ffn_w1=n(keys[8], (d_model, d_ff)),      # == torch conv1.weight(k=1).T
        ffn_w2=n(keys[9], (d_ff, d_model)),      # == torch conv2.weight(k=1).T
        proj_w=n(keys[10], (c_out, d_model, 3)),  # torch Conv1d(k=3) (out,in,k)
    )


def pack_params(raw, d_model, d_ff, c_out):
    Dp = _round_up(d_model, 128)
    Fp = _round_up(d_ff, 128)
    Cp = _round_up(c_out, 128)
    bf = jnp.bfloat16

    def padw(w, r, c):
        return jnp.pad(w, ((0, r - w.shape[0]), (0, c - w.shape[1])))

    sa_wqkv = jnp.concatenate([padw(raw["sa_wq"], Dp, Dp),
                               padw(raw["sa_wk"], Dp, Dp),
                               padw(raw["sa_wv"], Dp, Dp)], axis=1)       # (Dp, 3Dp)
    ca_wkv = jnp.concatenate([padw(raw["ca_wk"], Dp, Dp),
                              padw(raw["ca_wv"], Dp, Dp)], axis=1)        # (Dp, 2Dp)
    w_dd = jnp.stack([padw(raw["sa_wo"], Dp, Dp),
                      padw(raw["ca_wq"], Dp, Dp),
                      padw(raw["ca_wo"], Dp, Dp)], axis=0)                # (3, Dp, Dp)
    ffn_w1 = padw(raw["ffn_w1"], Dp, Fp)
    ffn_w2 = padw(raw["ffn_w2"], Fp, Dp)
    proj = jnp.zeros((3 * Dp, Cp), jnp.float32)
    for k in range(3):                         # tap k multiplies trend[t + k - 1]
        proj = proj.at[k * Dp:k * Dp + d_model, :c_out].set(raw["proj_w"][:, :, k].T)
    return dict(sa_wqkv=sa_wqkv.astype(bf), ca_wkv=ca_wkv.astype(bf),
                w_dd=w_dd.astype(bf), ffn_w1=ffn_w1.astype(bf),
                ffn_w2=ffn_w2.astype(bf), proj_w=proj.astype(bf))


# ----------------------------------------------------------------------------
# Pure-JAX f32 reference of the same forward pass (for correctness check)
# ----------------------------------------------------------------------------
def decoder_layer_reference(raw, x, cross, *, moving_avg):
    D = x.shape[-1]
    scale = 1.0 / (D ** 0.5)

    def sdpa(q, k, v):
        s = jnp.einsum('bqd,bkd->bqk', q, k) * scale
        p = jax.nn.softmax(s, axis=-1)
        return jnp.einsum('bqk,bkd->bqd', p, v)

    def decomp(z):
        K, L = moving_avg, z.shape[1]
        pad = (K - 1) // 2
        zp = jnp.concatenate([jnp.repeat(z[:, :1], pad, axis=1), z,
                              jnp.repeat(z[:, -1:], pad, axis=1)], axis=1)
        mean = sum(zp[:, k:k + L] for k in range(K)) / K
        return z - mean, mean

    attn = sdpa(x @ raw["sa_wq"], x @ raw["sa_wk"], x @ raw["sa_wv"])
    x = x + attn @ raw["sa_wo"]
    x, t1 = decomp(x)
    attn = sdpa(x @ raw["ca_wq"], cross @ raw["ca_wk"], cross @ raw["ca_wv"])
    x = x + attn @ raw["ca_wo"]
    x, t2 = decomp(x)
    y = jax.nn.relu(x @ raw["ffn_w1"]) @ raw["ffn_w2"]
    x, t3 = decomp(x + y)
    trend = t1 + t2 + t3
    w = raw["proj_w"]                                   # (c_out, D, 3)
    t_prev = jnp.roll(trend, 1, axis=1)
    t_next = jnp.roll(trend, -1, axis=1)
    out = t_prev @ w[:, :, 0].T + trend @ w[:, :, 1].T + t_next @ w[:, :, 2].T
    return x, out


if __name__ == "__main__":
    B, L, S = 2, 16, 24          # batch, decoder seq, encoder (cross) seq
    d_model, d_ff, c_out = 32, 64, 8
    moving_avg = 5               # kernel size of the series decomposition

    key = jax.random.PRNGKey(0)
    kx, kc, kp = jax.random.split(key, 3)
    x = jax.random.normal(kx, (B, L, d_model), dtype=jnp.float32)
    cross = jax.random.normal(kc, (B, S, d_model), dtype=jnp.float32)
    raw = init_params(kp, d_model, d_ff, c_out)
    packed = pack_params(raw, d_model, d_ff, c_out)

    fwd = jax.jit(functools.partial(decoder_layer_forward, d_model=d_model,
                                    c_out=c_out, moving_avg=moving_avg))
    out_x, residual_trend = fwd(packed, x, cross)
    jax.block_until_ready((out_x, residual_trend))

    assert out_x.shape == (B, L, d_model)
    assert residual_trend.shape == (B, L, c_out)
    assert jnp.all(jnp.isfinite(out_x)) and jnp.all(jnp.isfinite(residual_trend))

    # compare against the f32 reference (kernel uses bf16 matmuls -> loose tol)
    ref_x, ref_trend = decoder_layer_reference(raw, x, cross, moving_avg=moving_avg)
    assert float(jnp.max(jnp.abs(out_x - ref_x))) < 7.5e-2
    assert float(jnp.max(jnp.abs(residual_trend - ref_trend))) < 7.5e-2

    print("KERNEL_OK")
</pallas_src>

<mosaic_0001>
module attributes {stable_mosaic.version = 11 : i64} {
  func.func private @main(%arg0: i32) attributes {dimension_semantics = [#tpu.dimension_semantics<core_parallel>], iteration_bounds = array<i64: 2>, tpu.core_type = #tpu.core_type<sc_scalar_subcore>, window_params = []} {
    return
  }
}

module attributes {stable_mosaic.version = 11 : i64} {
  func.func private @main(%arg0: i32) attributes {dimension_semantics = [#tpu.dimension_semantics<core_parallel>], iteration_bounds = array<i64: 2>, tpu.core_type = #tpu.core_type<sc_scalar_subcore>, window_params = []} {
    return
  }
}

module attributes {stable_mosaic.version = 11 : i64} {
  func.func @_decoder_layer_kernel(%arg0: i32, %arg1: memref<2x16x128xf32, #tpu.memory_space<vmem>>, %arg2: memref<2x24x128xf32, #tpu.memory_space<vmem>>, %arg3: memref<32x32xbf16, #tpu.memory_space<vmem>>, %arg4: memref<128x384xbf16, #tpu.memory_space<vmem>>, %arg5: memref<128x256xbf16, #tpu.memory_space<vmem>>, %arg6: memref<3x128x128xbf16, #tpu.memory_space<vmem>>, %arg7: memref<128x128xbf16, #tpu.memory_space<vmem>>, %arg8: memref<128x128xbf16, #tpu.memory_space<vmem>>, %arg9: memref<384x128xbf16, #tpu.memory_space<vmem>>, %arg10: memref<2x16x128xf32, #tpu.memory_space<vmem>>, %arg11: memref<2x16x128xf32, #tpu.memory_space<vmem>>) attributes {dimension_semantics = [#tpu.dimension_semantics<parallel>], iteration_bounds = array<i64: 1>, scalar_prefetch = 0 : i64, scratch_operands = 0 : i64, tpu.core_type = #tpu.core_type<tc>, window_params = [{transform_indices = @transform_0, window_bounds = array<i64: 2, 16, 128>}, {transform_indices = @transform_1, window_bounds = array<i64: 2, 24, 128>}, {pipeline_mode = #tpu.pipeline_mode<synchronous>, transform_indices = @transform_2, window_bounds = array<i64: 32, 32>}, {pipeline_mode = #tpu.pipeline_mode<synchronous>, transform_indices = @transform_3, window_bounds = array<i64: 128, 384>}, {pipeline_mode = #tpu.pipeline_mode<synchronous>, transform_indices = @transform_4, window_bounds = array<i64: 128, 256>}, {pipeline_mode = #tpu.pipeline_mode<synchronous>, transform_indices = @transform_5, window_bounds = array<i64: 3, 128, 128>}, {pipeline_mode = #tpu.pipeline_mode<synchronous>, transform_indices = @transform_6, window_bounds = array<i64: 128, 128>}, {pipeline_mode = #tpu.pipeline_mode<synchronous>, transform_indices = @transform_7, window_bounds = array<i64: 128, 128>}, {pipeline_mode = #tpu.pipeline_mode<synchronous>, transform_indices = @transform_8, window_bounds = array<i64: 384, 128>}, {transform_indices = @transform_9, window_bounds = array<i64: 2, 16, 128>}, {transform_indices = @transform_10, window_bounds = array<i64: 2, 16, 128>}]} {
    %c0 = arith.constant 0 : index
    %c0_0 = arith.constant 0 : index
    %c0_1 = arith.constant 0 : index
    %0 = vector.load %arg1[%c0, %c0_0, %c0_1] : memref<2x16x128xf32, #tpu.memory_space<vmem>>, vector<2x16x128xf32>
    %1 = vector.shape_cast %0 : vector<2x16x128xf32> to vector<32x128xf32>
    %c0_2 = arith.constant 0 : index
    %c0_3 = arith.constant 0 : index
    %2 = vector.load %arg3[%c0_2, %c0_3] : memref<32x32xbf16, #tpu.memory_space<vmem>>, vector<32x32xbf16>
    %c0_4 = arith.constant 0 : index
    %c0_5 = arith.constant 0 : index
    %3 = vector.load %arg4[%c0_4, %c0_5] : memref<128x384xbf16, #tpu.memory_space<vmem>>, vector<128x384xbf16>
    %4 = arith.truncf %1 : vector<32x128xf32> to vector<32x128xbf16>
    %cst = arith.constant dense<0.000000e+00> : vector<32x384xf32>
    %5 = tpu.matmul %4, %3, %cst {dimension_numbers = #tpu.dot_dimension_numbers<[1], [0], [0], [1], [0, 0, 1, 1], [], []>} : vector<32x128xbf16>, vector<128x384xbf16>, vector<32x384xf32> -> vector<32x384xf32>
    %6 = vector.shape_cast %5 : vector<32x384xf32> to vector<2x16x384xf32>
    %7 = vector.extract_strided_slice %6 {offsets = [0, 0, 0], sizes = [2, 16, 128], strides = [1, 1, 1]} : vector<2x16x384xf32> to vector<2x16x128xf32>
    %8 = vector.extract_strided_slice %6 {offsets = [0, 0, 128], sizes = [2, 16, 128], strides = [1, 1, 1]} : vector<2x16x384xf32> to vector<2x16x128xf32>
    %9 = vector.extract_strided_slice %6 {offsets = [0, 0, 256], sizes = [2, 16, 128], strides = [1, 1, 1]} : vector<2x16x384xf32> to vector<2x16x128xf32>
    %10 = arith.truncf %7 : vector<2x16x128xf32> to vector<2x16x128xbf16>
    %11 = arith.truncf %8 : vector<2x16x128xf32> to vector<2x16x128xbf16>
    "tpu.trace_start"() <{level = 10 : i32, message = "bqd,bkd->bqk"}> : () -> ()
    %cst_6 = arith.constant dense<0.000000e+00> : vector<2x16x16xf32>
    %12 = tpu.matmul %10, %11, %cst_6 {dimension_numbers = #tpu.dot_dimension_numbers<[2], [2], [1], [1], [0, 0, 0, 1, 1, 1], [0], [0]>} : vector<2x16x128xbf16>, vector<2x16x128xbf16>, vector<2x16x16xf32> -> vector<2x16x16xf32>
    "tpu.trace_stop"() : () -> ()
    %cst_7 = arith.constant 0.176776692 : f32
    %13 = vector.broadcast %cst_7 : f32 to vector<2x16x16xf32>
    %14 = arith.mulf %12, %13 : vector<2x16x16xf32>
    %cst_8 = arith.constant dense<0xFF800000> : vector<2x16xf32>
    %15 = vector.multi_reduction <maximumf>, %14, %cst_8 [2] : vector<2x16x16xf32> to vector<2x16xf32>
    %16 = vector.shape_cast %15 : vector<2x16xf32> to vector<2x16x1xf32>
    %17 = vector.broadcast %16 : vector<2x16x1xf32> to vector<2x16x16xf32>
    %18 = arith.subf %14, %17 : vector<2x16x16xf32>
    %19 = math.exp %18 : vector<2x16x16xf32>
    %cst_9 = arith.constant dense<0.000000e+00> : vector<2x16xf32>
    %20 = vector.multi_reduction <add>, %19, %cst_9 [2] : vector<2x16x16xf32> to vector<2x16xf32>
    %21 = vector.shape_cast %20 : vector<2x16xf32> to vector<2x16x1xf32>
    %22 = tpu.reciprocal %21 {approx = true} : vector<2x16x1xf32> -> vector<2x16x1xf32>
    %23 = vector.broadcast %22 : vector<2x16x1xf32> to vector<2x16x16xf32>
    %24 = arith.mulf %19, %23 : vector<2x16x16xf32>
    %25 = arith.truncf %24 : vector<2x16x16xf32> to vector<2x16x16xbf16>
    %26 = arith.truncf %9 : vector<2x16x128xf32> to vector<2x16x128xbf16>
    "tpu.trace_start"() <{level = 10 : i32, message = "bqk,bkd->bqd"}> : () -> ()
    %cst_10 = arith.constant dense<0.000000e+00> : vector<2x16x128xf32>
    %27 = tpu.matmul %25, %26, %cst_10 {dimension_numbers = #tpu.dot_dimension_numbers<[2], [1], [1], [2], [0, 0, 0, 1, 1, 2], [0], [0]>} : vector<2x16x16xbf16>, vector<2x16x128xbf16>, vector<2x16x128xf32> -> vector<2x16x128xf32>
    "tpu.trace_stop"() : () -> ()
    %28 = vector.shape_cast %27 : vector<2x16x128xf32> to vector<32x128xf32>
    %c0_11 = arith.constant 0 : index
    %c0_12 = arith.constant 0 : index
    %c0_13 = arith.constant 0 : index
    %29 = vector.load %arg6[%c0_11, %c0_12, %c0_13] : memref<3x128x128xbf16, #tpu.memory_space<vmem>>, vector<1x128x128xbf16>
    %30 = vector.shape_cast %29 : vector<1x128x128xbf16> to vector<128x128xbf16>
    %31 = arith.truncf %28 : vector<32x128xf32> to vector<32x128xbf16>
    %cst_14 = arith.constant dense<0.000000e+00> : vector<32x128xf32>
    %32 = tpu.matmul %31, %30, %cst_14 {dimension_numbers = #tpu.dot_dimension_numbers<[1], [0], [0], [1], [0, 0, 1, 1], [], []>} : vector<32x128xbf16>, vector<128x128xbf16>, vector<32x128xf32> -> vector<32x128xf32>
    %33 = arith.addf %1, %32 : vector<32x128xf32>
    %34 = arith.truncf %33 : vector<32x128xf32> to vector<32x128xbf16>
    %cst_15 = arith.constant dense<0.000000e+00> : vector<32x128xf32>
    %35 = tpu.matmul %2, %34, %cst_15 {dimension_numbers = #tpu.dot_dimension_numbers<[1], [0], [0], [1], [0, 0, 1, 1], [], []>} : vector<32x32xbf16>, vector<32x128xbf16>, vector<32x128xf32> -> vector<32x128xf32>
    %36 = arith.subf %33, %35 : vector<32x128xf32>
    %c1 = arith.constant 1 : index
    %c0_16 = arith.constant 0 : index
    %c0_17 = arith.constant 0 : index
    %37 = vector.load %arg6[%c1, %c0_16, %c0_17] : memref<3x128x128xbf16, #tpu.memory_space<vmem>>, vector<1x128x128xbf16>
    %38 = vector.shape_cast %37 : vector<1x128x128xbf16> to vector<128x128xbf16>
    %39 = arith.truncf %36 : vector<32x128xf32> to vector<32x128xbf16>
    %cst_18 = arith.constant dense<0.000000e+00> : vector<32x128xf32>
    %40 = tpu.matmul %39, %38, %cst_18 {dimension_numbers = #tpu.dot_dimension_numbers<[1], [0], [0], [1], [0, 0, 1, 1], [], []>} : vector<32x128xbf16>, vector<128x128xbf16>, vector<32x128xf32> -> vector<32x128xf32>
    %41 = vector.shape_cast %40 : vector<32x128xf32> to vector<2x16x128xf32>
    %c0_19 = arith.constant 0 : index
    %c0_20 = arith.constant 0 : index
    %c0_21 = arith.constant 0 : index
    %42 = vector.load %arg2[%c0_19, %c0_20, %c0_21] : memref<2x24x128xf32, #tpu.memory_space<vmem>>, vector<2x24x128xf32>
    %43 = vector.shape_cast %42 : vector<2x24x128xf32> to vector<48x128xf32>
    %c0_22 = arith.constant 0 : index
    %c0_23 = arith.constant 0 : index
    %44 = vector.load %arg5[%c0_22, %c0_23] : memref<128x256xbf16, #tpu.memory_space<vmem>>, vector<128x256xbf16>
    %45 = arith.truncf %43 : vector<48x128xf32> to vector<48x128xbf16>
    %cst_24 = arith.constant dense<0.000000e+00> : vector<48x256xf32>
    %46 = tpu.matmul %45, %44, %cst_24 {dimension_numbers = #tpu.dot_dimension_numbers<[1], [0], [0], [1], [0, 0, 1, 1], [], []>} : vector<48x128xbf16>, vector<128x256xbf16>, vector<48x256xf32> -> vector<48x256xf32>
    %47 = vector.shape_cast %46 : vector<48x256xf32> to vector<2x24x256xf32>
    %48 = vector.extract_strided_slice %47 {offsets = [0, 0, 0], sizes = [2, 24, 128], strides = [1, 1, 1]} : vector<2x24x256xf32> to vector<2x24x128xf32>
    %49 = vector.extract_strided_slice %47 {offsets = [0, 0, 128], sizes = [2, 24, 128], strides = [1, 1, 1]} : vector<2x24x256xf32> to vector<2x24x128xf32>
    %50 = arith.truncf %41 : vector<2x16x128xf32> to vector<2x16x128xbf16>
    %51 = arith.truncf %48 : vector<2x24x128xf32> to vector<2x24x128xbf16>
    "tpu.trace_start"() <{level = 10 : i32, message = "bqd,bkd->bqk"}> : () -> ()
    %cst_25 = arith.constant dense<0.000000e+00> : vector<2x16x24xf32>
    %52 = tpu.matmul %50, %51, %cst_25 {dimension_numbers = #tpu.dot_dimension_numbers<[2], [2], [1], [1], [0, 0, 0, 1, 1, 1], [0], [0]>} : vector<2x16x128xbf16>, vector<2x24x128xbf16>, vector<2x16x24xf32> -> vector<2x16x24xf32>
    "tpu.trace_stop"() : () -> ()
    %cst_26 = arith.constant 0.176776692 : f32
    %53 = vector.broadcast %cst_26 : f32 to vector<2x16x24xf32>
    %54 = arith.mulf %52, %53 : vector<2x16x24xf32>
    %cst_27 = arith.constant dense<0xFF800000> : vector<2x16xf32>
    %55 = vector.multi_reduction <maximumf>, %54, %cst_27 [2] : vector<2x16x24xf32> to vector<2x16xf32>
    %56 = vector.shape_cast %55 : vector<2x16xf32> to vector<2x16x1xf32>
    %57 = vector.broadcast %56 : vector<2x16x1xf32> to vector<2x16x24xf32>
    %58 = arith.subf %54, %57 : vector<2x16x24xf32>
    %59 = math.exp %58 : vector<2x16x24xf32>
    %cst_28 = arith.constant dense<0.000000e+00> : vector<2x16xf32>
    %60 = vector.multi_reduction <add>, %59, %cst_28 [2] : vector<2x16x24xf32> to vector<2x16xf32>
    %61 = vector.shape_cast %60 : vector<2x16xf32> to vector<2x16x1xf32>
    %62 = tpu.reciprocal %61 {approx = true} : vector<2x16x1xf32> -> vector<2x16x1xf32>
    %63 = vector.broadcast %62 : vector<2x16x1xf32> to vector<2x16x24xf32>
    %64 = arith.mulf %59, %63 : vector<2x16x24xf32>
    %65 = arith.truncf %64 : vector<2x16x24xf32> to vector<2x16x24xbf16>
    %66 = arith.truncf %49 : vector<2x24x128xf32> to vector<2x24x128xbf16>
    "tpu.trace_start"() <{level = 10 : i32, message = "bqk,bkd->bqd"}> : () -> ()
    %cst_29 = arith.constant dense<0.000000e+00> : vector<2x16x128xf32>
    %67 = tpu.matmul %65, %66, %cst_29 {dimension_numbers = #tpu.dot_dimension_numbers<[2], [1], [1], [2], [0, 0, 0, 1, 1, 2], [0], [0]>} : vector<2x16x24xbf16>, vector<2x24x128xbf16>, vector<2x16x128xf32> -> vector<2x16x128xf32>
    "tpu.trace_stop"() : () -> ()
    %68 = vector.shape_cast %67 : vector<2x16x128xf32> to vector<32x128xf32>
    %c2 = arith.constant 2 : index
    %c0_30 = arith.constant 0 : index
    %c0_31 = arith.constant 0 : index
    %69 = vector.load %arg6[%c2, %c0_30, %c0_31] : memref<3x128x128xbf16, #tpu.memory_space<vmem>>, vector<1x128x128xbf16>
    %70 = vector.shape_cast %69 : vector<1x128x128xbf16> to vector<128x128xbf16>
    %71 = arith.truncf %68 : vector<32x128xf32> to vector<32x128xbf16>
    %cst_32 = arith.constant dense<0.000000e+00> : vector<32x128xf32>
    %72 = tpu.matmul %71, %70, %cst_32 {dimension_numbers = #tpu.dot_dimension_numbers<[1], [0], [0], [1], [0, 0, 1, 1], [], []>} : vector<32x128xbf16>, vector<128x128xbf16>, vector<32x128xf32> -> vector<32x128xf32>
    %73 = arith.addf %36, %72 : vector<32x128xf32>
    %74 = arith.truncf %73 : vector<32x128xf32> to vector<32x128xbf16>
    %cst_33 = arith.constant dense<0.000000e+00> : vector<32x128xf32>
    %75 = tpu.matmul %2, %74, %cst_33 {dimension_numbers = #tpu.dot_dimension_numbers<[1], [0], [0], [1], [0, 0, 1, 1], [], []>} : vector<32x32xbf16>, vector<32x128xbf16>, vector<32x128xf32> -> vector<32x128xf32>
    %76 = arith.subf %73, %75 : vector<32x128xf32>
    %77 = arith.addf %35, %75 : vector<32x128xf32>
    %c0_34 = arith.constant 0 : index
    %c0_35 = arith.constant 0 : index
    %78 = vector.load %arg7[%c0_34, %c0_35] : memref<128x128xbf16, #tpu.memory_space<vmem>>, vector<128x128xbf16>
    %79 = arith.truncf %76 : vector<32x128xf32> to vector<32x128xbf16>
    %cst_36 = arith.constant dense<0.000000e+00> : vector<32x128xf32>
    %80 = tpu.matmul %79, %78, %cst_36 {dimension_numbers = #tpu.dot_dimension_numbers<[1], [0], [0], [1], [0, 0, 1, 1], [], []>} : vector<32x128xbf16>, vector<128x128xbf16>, vector<32x128xf32> -> vector<32x128xf32>
    %cst_37 = arith.constant 0.000000e+00 : f32
    %81 = vector.broadcast %cst_37 : f32 to vector<32x128xf32>
    %82 = arith.maximumf %80, %81 : vector<32x128xf32>
    %c0_38 = arith.constant 0 : index
    %c0_39 = arith.constant 0 : index
    %83 = vector.load %arg8[%c0_38, %c0_39] : memref<128x128xbf16, #tpu.memory_space<vmem>>, vector<128x128xbf16>
    %84 = arith.truncf %82 : vector<32x128xf32> to vector<32x128xbf16>
    %cst_40 = arith.constant dense<0.000000e+00> : vector<32x128xf32>
    %85 = tpu.matmul %84, %83, %cst_40 {dimension_numbers = #tpu.dot_dimension_numbers<[1], [0], [0], [1], [0, 0, 1, 1], [], []>} : vector<32x128xbf16>, vector<128x128xbf16>, vector<32x128xf32> -> vector<32x128xf32>
    %86 = arith.addf %76, %85 : vector<32x128xf32>
    %87 = arith.truncf %86 : vector<32x128xf32> to vector<32x128xbf16>
    %cst_41 = arith.constant dense<0.000000e+00> : vector<32x128xf32>
    %88 = tpu.matmul %2, %87, %cst_41 {dimension_numbers = #tpu.dot_dimension_numbers<[1], [0], [0], [1], [0, 0, 1, 1], [], []>} : vector<32x32xbf16>, vector<32x128xbf16>, vector<32x128xf32> -> vector<32x128xf32>
    %89 = arith.subf %86, %88 : vector<32x128xf32>
    %90 = arith.addf %77, %88 : vector<32x128xf32>
    %91 = vector.shape_cast %90 : vector<32x128xf32> to vector<2x16x128xf32>
    %92 = vector.extract_strided_slice %91 {offsets = [0, 0, 0], sizes = [1, 16, 128], strides = [1, 1, 1]} : vector<2x16x128xf32> to vector<1x16x128xf32>
    %93 = vector.shape_cast %92 : vector<1x16x128xf32> to vector<16x128xf32>
    %c1_i32 = arith.constant 1 : i32
    %94 = tpu.dynamic_rotate %93 by %c1_i32 dim 0 : vector<16x128xf32>, i32 -> vector<16x128xf32>
    %c15_i32 = arith.constant 15 : i32
    %95 = tpu.dynamic_rotate %93 by %c15_i32 dim 0 : vector<16x128xf32>, i32 -> vector<16x128xf32>
    %96 = tpu.concatenate %94, %93, %95 in 1 : vector<16x128xf32>, vector<16x128xf32>, vector<16x128xf32> -> vector<16x384xf32>
    %97 = vector.extract_strided_slice %91 {offsets = [1, 0, 0], sizes = [1, 16, 128], strides = [1, 1, 1]} : vector<2x16x128xf32> to vector<1x16x128xf32>
    %98 = vector.shape_cast %97 : vector<1x16x128xf32> to vector<16x128xf32>
    %c1_i32_42 = arith.constant 1 : i32
    %99 = tpu.dynamic_rotate %98 by %c1_i32_42 dim 0 : vector<16x128xf32>, i32 -> vector<16x128xf32>
    %c15_i32_43 = arith.constant 15 : i32
    %100 = tpu.dynamic_rotate %98 by %c15_i32_43 dim 0 : vector<16x128xf32>, i32 -> vector<16x128xf32>
    %101 = tpu.concatenate %99, %98, %100 in 1 : vector<16x128xf32>, vector<16x128xf32>, vector<16x128xf32> -> vector<16x384xf32>
    %102 = tpu.concatenate %96, %101 in 0 : vector<16x384xf32>, vector<16x384xf32> -> vector<32x384xf32>
    %103 = arith.truncf %102 : vector<32x384xf32> to vector<32x384xbf16>
    %c0_44 = arith.constant 0 : index
    %c0_45 = arith.constant 0 : index
    %104 = vector.load %arg9[%c0_44, %c0_45] : memref<384x128xbf16, #tpu.memory_space<vmem>>, vector<384x128xbf16>
    %cst_46 = arith.constant dense<0.000000e+00> : vector<32x128xf32>
    %105 = tpu.matmul %103, %104, %cst_46 {dimension_numbers = #tpu.dot_dimension_numbers<[1], [0], [0], [1], [0, 0, 1, 1], [], []>} : vector<32x384xbf16>, vector<384x128xbf16>, vector<32x128xf32> -> vector<32x128xf32>
    %106 = vector.shape_cast %89 : vector<32x128xf32> to vector<2x16x128xf32>
    %c0_47 = arith.constant 0 : index
    %c0_48 = arith.constant 0 : index
    %c0_49 = arith.constant 0 : index
    %107 = vector.load %arg10[%c0_47, %c0_48, %c0_49] : memref<2x16x128xf32, #tpu.memory_space<vmem>>, vector<2x16x128xf32>
    tpu.vector_store %arg10[%c0_47, %c0_48, %c0_49], %106 {strides = array<i32>} : memref<2x16x128xf32, #tpu.memory_space<vmem>>, vector<2x16x128xf32>,
    %108 = vector.shape_cast %105 : vector<32x128xf32> to vector<2x16x128xf32>
    %c0_50 = arith.constant 0 : index
    %c0_51 = arith.constant 0 : index
    %c0_52 = arith.constant 0 : index
    %109 = vector.load %arg11[%c0_50, %c0_51, %c0_52] : memref<2x16x128xf32, #tpu.memory_space<vmem>>, vector<2x16x128xf32>
    tpu.vector_store %arg11[%c0_50, %c0_51, %c0_52], %108 {strides = array<i32>} : memref<2x16x128xf32, #tpu.memory_space<vmem>>, vector<2x16x128xf32>,
    return
  }
  func.func @transform_0(%arg0: i32) -> (i32, i32, i32) {
    %c0_i32 = arith.constant 0 : i32
    %c0_i32_0 = arith.constant 0 : i32
    %c0_i32_1 = arith.constant 0 : i32
    return %arg0, %c0_i32, %c0_i32_0 : i32, i32, i32
  }
  func.func @transform_1(%arg0: i32) -> (i32, i32, i32) {
    %c0_i32 = arith.constant 0 : i32
    %c0_i32_0 = arith.constant 0 : i32
    %c0_i32_1 = arith.constant 0 : i32
    return %arg0, %c0_i32, %c0_i32_0 : i32, i32, i32
  }
  func.func @transform_2(%arg0: i32) -> (i32, i32) {
    %c0_i32 = arith.constant 0 : i32
    %c0_i32_0 = arith.constant 0 : i32
    %c0_i32_1 = arith.constant 0 : i32
    return %c0_i32, %c0_i32_0 : i32, i32
  }
  func.func @transform_3(%arg0: i32) -> (i32, i32) {
    %c0_i32 = arith.constant 0 : i32
    %c0_i32_0 = arith.constant 0 : i32
    %c0_i32_1 = arith.constant 0 : i32
    return %c0_i32, %c0_i32_0 : i32, i32
  }
  func.func @transform_4(%arg0: i32) -> (i32, i32) {
    %c0_i32 = arith.constant 0 : i32
    %c0_i32_0 = arith.constant 0 : i32
    %c0_i32_1 = arith.constant 0 : i32
    return %c0_i32, %c0_i32_0 : i32, i32
  }
  func.func @transform_5(%arg0: i32) -> (i32, i32, i32) {
    %c0_i32 = arith.constant 0 : i32
    %c0_i32_0 = arith.constant 0 : i32
    %c0_i32_1 = arith.constant 0 : i32
    %c0_i32_2 = arith.constant 0 : i32
    return %c0_i32, %c0_i32_0, %c0_i32_1 : i32, i32, i32
  }
  func.func @transform_6(%arg0: i32) -> (i32, i32) {
    %c0_i32 = arith.constant 0 : i32
    %c0_i32_0 = arith.constant 0 : i32
    %c0_i32_1 = arith.constant 0 : i32
    return %c0_i32, %c0_i32_0 : i32, i32
  }
  func.func @transform_7(%arg0: i32) -> (i32, i32) {
    %c0_i32 = arith.constant 0 : i32
    %c0_i32_0 = arith.constant 0 : i32
    %c0_i32_1 = arith.constant 0 : i32
    return %c0_i32, %c0_i32_0 : i32, i32
  }
  func.func @transform_8(%arg0: i32) -> (i32, i32) {
    %c0_i32 = arith.constant 0 : i32
    %c0_i32_0 = arith.constant 0 : i32
    %c0_i32_1 = arith.constant 0 : i32
    return %c0_i32, %c0_i32_0 : i32, i32
  }
  func.func @transform_9(%arg0: i32) -> (i32, i32, i32) {
    %c0_i32 = arith.constant 0 : i32
    %c0_i32_0 = arith.constant 0 : i32
    %c0_i32_1 = arith.constant 0 : i32
    return %arg0, %c0_i32, %c0_i32_0 : i32, i32, i32
  }
  func.func @transform_10(%arg0: i32) -> (i32, i32, i32) {
    %c0_i32 = arith.constant 0 : i32
    %c0_i32_0 = arith.constant 0 : i32
    %c0_i32_1 = arith.constant 0 : i32
    return %arg0, %c0_i32, %c0_i32_0 : i32, i32, i32
  }
}

</mosaic_0001>

<llo_original>
// kernel: decoder_layer_forward.1
$region0: #{decoder_layer_forward.1}
  #allocation0 [shape = 'u32[]', space=smem, size = 0x4, offset = 0x4, fixed_abs, tag = 'smem constant byte address 0x4 - core index']
  #allocation1 [shape = 'u32[144,128]{1,0:T(1,128)}', space=vmem, size = 0x12000, scoped, tag = 'internal scratch']
  %s0 = inlined_call_operand.vmem [shape: f32[2,16,128], index: 0, kind: input, shape index: {}]
  %s1 = inlined_call_operand.vmem [shape: f32[2,24,128], index: 1, kind: input, shape index: {}]
  %s2 = inlined_call_operand.vmem [shape: bf16[32,32], index: 2, kind: input, shape index: {}]
  %s3 = inlined_call_operand.vmem [shape: bf16[128,384], index: 3, kind: input, shape index: {}]
  %s4 = inlined_call_operand.vmem [shape: bf16[128,256], index: 4, kind: input, shape index: {}]
  %s5 = inlined_call_operand.vmem [shape: bf16[3,128,128], index: 5, kind: input, shape index: {}]
  %s6 = inlined_call_operand.vmem [shape: bf16[128,128], index: 6, kind: input, shape index: {}]
  %s7 = inlined_call_operand.vmem [shape: bf16[128,128], index: 7, kind: input, shape index: {}]
  %s8 = inlined_call_operand.vmem [shape: bf16[384,128], index: 8, kind: input, shape index: {}]
  %s9 = inlined_call_operand.hbm [shape: f32[2,16,128], index: 9, kind: output, shape index: {0}]
  %s10 = inlined_call_operand.vmem [shape: f32[2,16,128], index: 10, kind: output, shape index: {1}]
  %11 = xla_tuple %s9, %s10
  %s12 = sld [smem:[#allocation0]]
  $region54: #{decoder_layer_forward.1} parent=0
    _
  %s14 = ssub.s32 1, %s12
  %s15 = scalar_select 0, %s14, %s12
  $region1: #{decoder_layer_forward.1} parent=0
    #allocation2 [shape = 'u8[16384]{0}', space=vmem, size = 0x4000, scoped, tag = 'output window, operand 0, single buffered']
    #allocation3 [shape = 's32[1]{0}', space=sflag, size = 0x4, scoped, tag = 'scoped memory for decoder_layer_forward.1']
    %16 = vsyncpa [#allocation3], 0
    // Predicated region
    $region2: #{decoder_layer_forward.1} parent=1 // pred_check
      _
    $region3: #{decoder_layer_forward.1} parent=1 // pred_check_branch
      %18 = sbr.rel (0) target = $region5
    $region4: #{decoder_layer_forward.1} parent=1 // pred_region
      _
    $region5: #{decoder_layer_forward.1} parent=1 // pred_fallthru
      _
    // Predicated region
    $region6: #{decoder_layer_forward.1} parent=1 // pred_check
      _
    $region7: #{decoder_layer_forward.1} parent=1 // pred_check_branch
      %20 = sbr.rel (0) target = $region9
    $region8: #{decoder_layer_forward.1} parent=1 // pred_region
      _
    $region9: #{decoder_layer_forward.1} parent=1 // pred_fallthru
      _
    // Predicated region
    $region10: #{decoder_layer_forward.1} parent=1 // pred_check
      _
    $region11: #{decoder_layer_forward.1} parent=1 // pred_check_branch
      %22 = sbr.rel (0) target = $region13
    $region12: #{decoder_layer_forward.1} parent=1 // pred_region
      _
    $region13: #{decoder_layer_forward.1} parent=1 // pred_fallthru
      _
    // Predicated region
    $region14: #{decoder_layer_forward.1} parent=1 // pred_check
      _
    $region15: #{decoder_layer_forward.1} parent=1 // pred_check_branch
      %24 = sbr.rel (0) target = $region17
    $region16: #{decoder_layer_forward.1} parent=1 // pred_region
      _
    $region17: #{decoder_layer_forward.1} parent=1 // pred_fallthru
      _
    // Predicated region
    $region18: #{decoder_layer_forward.1} parent=1 // pred_check
      _
    $region19: #{decoder_layer_forward.1} parent=1 // pred_check_branch
      %26 = sbr.rel (0) target = $region21
    $region20: #{decoder_layer_forward.1} parent=1 // pred_region
      _
    $region21: #{decoder_layer_forward.1} parent=1 // pred_fallthru
      _
    // Predicated region
    $region22: #{decoder_layer_forward.1} parent=1 // pred_check
      _
    $region23: #{decoder_layer_forward.1} parent=1 // pred_check_branch
      %28 = sbr.rel (0) target = $region25
    $region24: #{decoder_layer_forward.1} parent=1 // pred_region
      _
    $region25: #{decoder_layer_forward.1} parent=1 // pred_fallthru
      _
    // Predicated region
    $region26: #{decoder_layer_forward.1} parent=1 // pred_check
      _
    $region27: #{decoder_layer_forward.1} parent=1 // pred_check_branch
      %30 = sbr.rel (0) target = $region29
    $region28: #{decoder_layer_forward.1} parent=1 // pred_region
      _
    $region29: #{decoder_layer_forward.1} parent=1 // pred_fallthru
      _
    // Predicated region
    $region30: #{decoder_layer_forward.1} parent=1 // pred_check
      _
    $region31: #{decoder_layer_forward.1} parent=1 // pred_check_branch
      %32 = sbr.rel (0) target = $region33
    $region32: #{decoder_layer_forward.1} parent=1 // pred_region
      _
    $region33: #{decoder_layer_forward.1} parent=1 // pred_fallthru
      _
    // Predicated region
    $region34: #{decoder_layer_forward.1} parent=1 // pred_check
      _
    $region35: #{decoder_layer_forward.1} parent=1 // pred_check_branch
      %34 = sbr.rel (0) target = $region37
    $region36: #{decoder_layer_forward.1} parent=1 // pred_region
      _
    $region37: #{decoder_layer_forward.1} parent=1 // pred_fallthru
      _
    %v36 = vld [vmem:[%s0] sm:$0xff]
    %v37 = vld [vmem:[%s0 + $0x8] sm:$0xff]
    %v38 = vld [vmem:[%s0 + $0x10] sm:$0xff]
    %v39 = vld [vmem:[%s0 + $0x18] sm:$0xff]
    %v40 = vld [vmem:[%s2] sm:$0xf]
    %v41 = vld [vmem:[%s2 + $0x4] sm:$0xf]
    %v42 = vld [vmem:[%s2 + $0x8] sm:$0xf]
    %v43 = vld [vmem:[%s2 + $0xc] sm:$0xf]
    %v44 = vld [vmem:[%s3] sm:$0xff]
    %v45 = vld [vmem:[%s3 + $0x8] sm:$0xf]
    %v46 = vld [vmem:[%s3 + $0xc] sm:$0xff]
    %v47 = vld [vmem:[%s3 + $0x14] sm:$0xf]
    %v48 = vld [vmem:[%s3 + $0x18] sm:$0xff]
    %v49 = vld [vmem:[%s3 + $0x20] sm:$0xf]
    %v50 = vld [vmem:[%s3 + $0x24] sm:$0xff]
    %v51 = vld [vmem:[%s3 + $0x2c] sm:$0xf]
    %v52 = vld [vmem:[%s3 + $0x30] sm:$0xff]
    %v53 = vld [vmem:[%s3 + $0x38] sm:$0xf]
    %v54 = vld [vmem:[%s3 + $0x3c] sm:$0xff]
    %v55 = vld [vmem:[%s3 + $0x44] sm:$0xf]
    %v56 = vld [vmem:[%s3 + $0x48] sm:$0xff]
    %v57 = vld [vmem:[%s3 + $0x50] sm:$0xf]
    %v58 = vld [vmem:[%s3 + $0x54] sm:$0xff]
    %v59 = vld [vmem:[%s3 + $0x5c] sm:$0xf]
    %v60 = vld [vmem:[%s3 + $0x60] sm:$0xff]
    %v61 = vld [vmem:[%s3 + $0x68] sm:$0xf]
    %v62 = vld [vmem:[%s3 + $0x6c] sm:$0xff]
    %v63 = vld [vmem:[%s3 + $0x74] sm:$0xf]
    %v64 = vld [vmem:[%s3 + $0x78] sm:$0xff]
    %v65 = vld [vmem:[%s3 + $0x80] sm:$0xf]
    %v66 = vld [vmem:[%s3 + $0x84] sm:$0xff]
    %v67 = vld [vmem:[%s3 + $0x8c] sm:$0xf]
    %v68 = vld [vmem:[%s3 + $0x90] sm:$0xff]
    %v69 = vld [vmem:[%s3 + $0x98] sm:$0xf]
    %v70 = vld [vmem:[%s3 + $0x9c] sm:$0xff]
    %v71 = vld [vmem:[%s3 + $0xa4] sm:$0xf]
    %v72 = vld [vmem:[%s3 + $0xa8] sm:$0xff]
    %v73 = vld [vmem:[%s3 + $0xb0] sm:$0xf]
    %v74 = vld [vmem:[%s3 + $0xb4] sm:$0xff]
    %v75 = vld [vmem:[%s3 + $0xbc] sm:$0xf]
    %v76 = vpack.c.bf16 %v37, %v36
    %v77 = vpack.c.bf16 %v39, %v38
    %v110 = vunpack.c.l.b16 %v44
    %v111 = vunpack.c.h.b16 %v44
    %v112 = vunpack.c.l.b16 %v45
    %v113 = vunpack.c.l.b16 %v46
    %v114 = vunpack.c.h.b16 %v46
    %v115 = vunpack.c.l.b16 %v47
    %v116 = vunpack.c.l.b16 %v48
    %v117 = vunpack.c.h.b16 %v48
    %v118 = vunpack.c.l.b16 %v49
    %v119 = vunpack.c.l.b16 %v50
    %v120 = vunpack.c.h.b16 %v50
    %v121 = vunpack.c.l.b16 %v51
    %v122 = vunpack.c.l.b16 %v52
    %v123 = vunpack.c.h.b16 %v52
    %v124 = vunpack.c.l.b16 %v53
    %v125 = vunpack.c.l.b16 %v54
    %v126 = vunpack.c.h.b16 %v54
    %v127 = vunpack.c.l.b16 %v55
    %v128 = vunpack.c.l.b16 %v56
    %v129 = vunpack.c.h.b16 %v56
    %v130 = vunpack.c.l.b16 %v57
    %v131 = vunpack.c.l.b16 %v58
    %v132 = vunpack.c.h.b16 %v58
    %v133 = vunpack.c.l.b16 %v59
    %v134 = vunpack.c.l.b16 %v60
    %v135 = vunpack.c.h.b16 %v60
    %v136 = vunpack.c.l.b16 %v61
    %v137 = vunpack.c.l.b16 %v62
    %v138 = vunpack.c.h.b16 %v62
    %v139 = vunpack.c.l.b16 %v63
    %v140 = vunpack.c.l.b16 %v64
    %v141 = vunpack.c.h.b16 %v64
    %v142 = vunpack.c.l.b16 %v65
    %v143 = vunpack.c.l.b16 %v66
    %v144 = vunpack.c.h.b16 %v66
    %v145 = vunpack.c.l.b16 %v67
    %v146 = vunpack.c.l.b16 %v68
    %v147 = vunpack.c.h.b16 %v68
    %v148 = vunpack.c.l.b16 %v69
    %v149 = vunpack.c.l.b16 %v70
    %v150 = vunpack.c.h.b16 %v70
    %v151 = vunpack.c.l.b16 %v71
    %v152 = vunpack.c.l.b16 %v72
    %v153 = vunpack.c.h.b16 %v72
    %v154 = vunpack.c.l.b16 %v73
    %v155 = vunpack.c.l.b16 %v74
    %v156 = vunpack.c.h.b16 %v74
    %v157 = vunpack.c.l.b16 %v75
    %v158 = vpack.c.b16 %v113, %v110
    %v159 = vpack.c.b16 %v114, %v111
    %v160 = vpack.c.b16 %v115, %v112
    %v161 = vpack.c.b16 %v119, %v116
    %v162 = vpack.c.b16 %v120, %v117
    %v163 = vpack.c.b16 %v121, %v118
    %v164 = vpack.c.b16 %v125, %v122
    %v165 = vpack.c.b16 %v126, %v123
    %v166 = vpack.c.b16 %v127, %v124
    %v167 = vpack.c.b16 %v131, %v128
    %v168 = vpack.c.b16 %v132, %v129
    %v169 = vpack.c.b16 %v133, %v130
    %v170 = vpack.c.b16 %v137, %v134
    %v171 = vpack.c.b16 %v138, %v135
    %v172 = vpack.c.b16 %v139, %v136
    %v173 = vpack.c.b16 %v143, %v140
    %v174 = vpack.c.b16 %v144, %v141
    %v175 = vpack.c.b16 %v145, %v142
    %v176 = vpack.c.b16 %v149, %v146
    %v177 = vpack.c.b16 %v150, %v147
    %v178 = vpack.c.b16 %v151, %v148
    %v179 = vpack.c.b16 %v155, %v152
    %v180 = vpack.c.b16 %v156, %v153
    %v181 = vpack.c.b16 %v157, %v154
    %206 = vmatprep.subr.bf16.mxu0 %v180
    %207 = vmatpush1.bf16.msra.mxu0 %v179
    %208 = vmatprep.subr.bf16.mxu0 %v177
    %209 = vmatpush1.bf16.msra.mxu0 %v176
    %210 = vmatprep.subr.bf16.mxu0 %v174
    %211 = vmatpush1.bf16.msra.mxu0 %v173
    %212 = vmatprep.subr.bf16.mxu0 %v171
    %213 = vmatpush1.bf16.msra.mxu0 %v170
    %214 = vmatprep.subr.bf16.mxu0 %v168
    %215 = vmatpush1.bf16.msra.mxu0 %v167
    %216 = vmatprep.subr.bf16.mxu0 %v165
    %217 = vmatpush1.bf16.msra.mxu0 %v164
    %218 = vmatprep.subr.bf16.mxu0 %v162
    %219 = vmatpush1.bf16.msra.mxu0 %v161
    %220 = vmatprep.subr.bf16.mxu0 %v159
    %221 = vmatpush1.bf16.msra.mxu0 %v158
    %222 = vmatprep.subr.bf16.mxu0 0
    %223 = vmatpush2.bf16.msra.mxu0 0
    %224 = vmatprep.subr.bf16.mxu0 0
    %225 = vmatpush2.bf16.msra.mxu0 0
    %226 = vmatprep.subr.bf16.mxu0 0
    %227 = vmatpush2.bf16.msra.mxu0 0
    %228 = vmatprep.subr.bf16.mxu0 0
    %229 = vmatpush2.bf16.msra.mxu0 0
    %230 = vmatprep.subr.bf16.mxu0 0
    %231 = vmatpush2.bf16.msra.mxu0 0
    %232 = vmatprep.subr.bf16.mxu0 0
    %233 = vmatpush2.bf16.msra.mxu0 0
    %234 = vmatprep.subr.bf16.mxu0 0
    %235 = vmatpush2.bf16.msra.mxu0 0
    %236 = vmatprep.subr.bf16.mxu0 0
    %237 = vmatpush2.bf16.msra.mxu0 0
    %238 = vmatprep.mubr.bf16.mxu0 0
    %239 = vmatmul.mubr.bf16.gmra.mxu0 %v76
    %v240 = vpop.f32.mrf.mxu0
    %v241 = vadd.f32 0.0, %v240
    %v242 = vpop.f32.mrf.mxu0
    %v243 = vadd.f32 0.0, %v242
    %v244 = vpop.f32.mrf.mxu0
    %v245 = vadd.f32 0.0, %v244
    %v246 = vpop.f32.mrf.mxu0
    %v247 = vadd.f32 0.0, %v246
    %248 = vmatprep.mubr.bf16.mxu0 0
    %249 = vmatmul.mubr.bf16.gmra.mxu0 %v77
    %v250 = vpop.f32.mrf.mxu0
    %v251 = vadd.f32 0.0, %v250
    %v252 = vpop.f32.mrf.mxu0
    %v253 = vadd.f32 0.0, %v252
    %v254 = vpop.f32.mrf.mxu0
    %v255 = vadd.f32 0.0, %v254
    %v256 = vpop.f32.mrf.mxu0
    %v257 = vadd.f32 0.0, %v256
    %258 = vdwg.mxu0
    %259 = vmatprep.subr.bf16.mxu0 0
    %260 = vmatpush1.bf16.msra.mxu0 %v181
    %261 = vmatprep.subr.bf16.mxu0 0
    %262 = vmatpush1.bf16.msra.mxu0 %v178
    %263 = vmatprep.subr.bf16.mxu0 0
    %264 = vmatpush1.bf16.msra.mxu0 %v175
    %265 = vmatprep.subr.bf16.mxu0 0
    %266 = vmatpush1.bf16.msra.mxu0 %v172
    %267 = vmatprep.subr.bf16.mxu0 0
    %268 = vmatpush1.bf16.msra.mxu0 %v169
    %269 = vmatprep.subr.bf16.mxu0 0
    %270 = vmatpush1.bf16.msra.mxu0 %v166
    %271 = vmatprep.subr.bf16.mxu0 0
    %272 = vmatpush1.bf16.msra.mxu0 %v163
    %273 = vmatprep.subr.bf16.mxu0 0
    %274 = vmatpush1.bf16.msra.mxu0 %v160
    %275 = vmatprep.subr.bf16.mxu0 0
    %276 = vmatpush2.bf16.msra.mxu0 0
    %277 = vmatprep.subr.bf16.mxu0 0
    %278 = vmatpush2.bf16.msra.mxu0 0
    %279 = vmatprep.subr.bf16.mxu0 0
    %280 = vmatpush2.bf16.msra.mxu0 0
    %281 = vmatprep.subr.bf16.mxu0 0
    %282 = vmatpush2.bf16.msra.mxu0 0
    %283 = vmatprep.subr.bf16.mxu0 0
    %284 = vmatpush2.bf16.msra.mxu0 0
    %285 = vmatprep.subr.bf16.mxu0 0
    %286 = vmatpush2.bf16.msra.mxu0 0
    %287 = vmatprep.subr.bf16.mxu0 0
    %288 = vmatpush2.bf16.msra.mxu0 0
    %289 = vmatprep.subr.bf16.mxu0 0
    %290 = vmatpush2.bf16.msra.mxu0 0
    %291 = vmatprep.mubr.bf16.mxu0 0
    %292 = vmatmul.mubr.bf16.gmra.mxu0 %v76
    %v293 = vpop.f32.mrf.mxu0
    %v294 = vadd.f32 0.0, %v293
    %v295 = vpop.f32.mrf.mxu0
    %v296 = vpop.f32.mrf.mxu0
    %v297 = vadd.f32 0.0, %v296
    %v298 = vpop.f32.mrf.mxu0
    %299 = vmatprep.mubr.bf16.mxu0 0
    %300 = vmatmul.mubr.bf16.gmra.mxu0 %v77
    %v301 = vpop.f32.mrf.mxu0
    %v302 = vadd.f32 0.0, %v301
    %v303 = vpop.f32.mrf.mxu0
    %v304 = vpop.f32.mrf.mxu0
    %v305 = vadd.f32 0.0, %v304
    %v306 = vpop.f32.mrf.mxu0
    %307 = vdwg.mxu0
    %v308 = vpack.c.bf16 %v245, %v241
    %v309 = vpack.c.bf16 %v255, %v251
    %v310 = vpack.c.bf16 %v247, %v243
    %v311 = vpack.c.bf16 %v257, %v253
    %312 = vmatprep.subr.bf16.mxu0 0
    %313 = vmatpush1.bf16.xpose.msra.mxu0 0
    %314 = vmatprep.subr.bf16.mxu0 0
    %315 = vmatpush1.bf16.xpose.msra.mxu0 0
    %316 = vmatprep.subr.bf16.mxu0 0
    %317 = vmatpush1.bf16.xpose.msra.mxu0 0
    %318 = vmatprep.subr.bf16.mxu0 0
    %319 = vmatpush1.bf16.xpose.msra.mxu0 0
    %320 = vmatprep.subr.bf16.mxu0 0
    %321 = vmatpush1.bf16.xpose.msra.mxu0 0
    %322 = vmatprep.subr.bf16.mxu0 0
    %323 = vmatpush1.bf16.xpose.msra.mxu0 0
    %324 = vmatprep.subr.bf16.mxu0 0
    %325 = vmatpush1.bf16.xpose.msra.mxu0 0
    %326 = vmatprep.subr.bf16.mxu0 0
    %327 = vmatpush1.bf16.xpose.msra.mxu0 %v310
    %328 = vmatprep.subr.bf16.mxu0 0
    %329 = vmatpush2.bf16.xpose.msra.mxu0 0
    %330 = vmatprep.subr.bf16.mxu0 0
    %331 = vmatpush2.bf16.xpose.msra.mxu0 0
    %332 = vmatprep.subr.bf16.mxu0 0
    %333 = vmatpush2.bf16.xpose.msra.mxu0 0
    %334 = vmatprep.subr.bf16.mxu0 0
    %335 = vmatpush2.bf16.xpose.msra.mxu0 0
    %336 = vmatprep.subr.bf16.mxu0 0
    %337 = vmatpush2.bf16.xpose.msra.mxu0 0
    %338 = vmatprep.subr.bf16.mxu0 0
    %339 = vmatpush2.bf16.xpose.msra.mxu0 0
    %340 = vmatprep.subr.bf16.mxu0 0
    %341 = vmatpush2.bf16.xpose.msra.mxu0 0
    %342 = vmatprep.subr.bf16.mxu0 0
    %343 = vmatpush2.bf16.xpose.msra.mxu0 0
    %344 = vmatprep.mubr.bf16.mxu0 0
    %345 = vmatmul.mubr.bf16.gmra.mxu0 %v308
    %v346 = vpop.f32.mrf.mxu0
    %v347 = vadd.f32 0.0, %v346
    %v348 = vpop.f32.mrf.mxu0
    %v349 = vpop.f32.mrf.mxu0
    %v350 = vadd.f32 0.0, %v349
    %v351 = vpop.f32.mrf.mxu0
    %352 = vdwg.mxu0
    %353 = vmatprep.subr.bf16.mxu0 0
    %354 = vmatpush1.bf16.xpose.msra.mxu0 0
    %355 = vmatprep.subr.bf16.mxu0 0
    %356 = vmatpush1.bf16.xpose.msra.mxu0 0
    %357 = vmatprep.subr.bf16.mxu0 0
    %358 = vmatpush1.bf16.xpose.msra.mxu0 0
    %359 = vmatprep.subr.bf16.mxu0 0
    %360 = vmatpush1.bf16.xpose.msra.mxu0 0
    %361 = vmatprep.subr.bf16.mxu0 0
    %362 = vmatpush1.bf16.xpose.msra.mxu0 0
    %363 = vmatprep.subr.bf16.mxu0 0
    %364 = vmatpush1.bf16.xpose.msra.mxu0 0
    %365 = vmatprep.subr.bf16.mxu0 0
    %366 = vmatpush1.bf16.xpose.msra.mxu0 0
    %367 = vmatprep.subr.bf16.mxu0 0
    %368 = vmatpush1.bf16.xpose.msra.mxu0 %v311
    %369 = vmatprep.subr.bf16.mxu0 0
    %370 = vmatpush2.bf16.xpose.msra.mxu0 0
    %371 = vmatprep.subr.bf16.mxu0 0
    %372 = vmatpush2.bf16.xpose.msra.mxu0 0
    %373 = vmatprep.subr.bf16.mxu0 0
    %374 = vmatpush2.bf16.xpose.msra.mxu0 0
    %375 = vmatprep.subr.bf16.mxu0 0
    %376 = vmatpush2.bf16.xpose.msra.mxu0 0
    %377 = vmatprep.subr.bf16.mxu0 0
    %378 = vmatpush2.bf16.xpose.msra.mxu0 0
    %379 = vmatprep.subr.bf16.mxu0 0
    %380 = vmatpush2.bf16.xpose.msra.mxu0 0
    %381 = vmatprep.subr.bf16.mxu0 0
    %382 = vmatpush2.bf16.xpose.msra.mxu0 0
    %383 = vmatprep.subr.bf16.mxu0 0
    %384 = vmatpush2.bf16.xpose.msra.mxu0 0
    %385 = vmatprep.mubr.bf16.mxu0 0
    %386 = vmatmul.mubr.bf16.gmra.mxu0 %v309
    %v387 = vpop.f32.mrf.mxu0
    %v388 = vadd.f32 0.0, %v387
    %v389 = vpop.f32.mrf.mxu0
    %v390 = vpop.f32.mrf.mxu0
    %v391 = vadd.f32 0.0, %v390
    %v392 = vpop.f32.mrf.mxu0
    %393 = vdwg.mxu0
    %v394 = vmul.f32 %v347, 0.17677669
    %v395 = vmul.f32 %v350, 0.17677669
    %v396 = vmul.f32 %v388, 0.17677669
    %v397 = vmul.f32 %v391, 0.17677669
    %vm398 = vcmask 130048
    %v399 = vsel %vm398, %v394, -inf
    %400 = vmax.xlane.f32.xlu0 %v399
    %v401 = vpop.xlane.xlu0 %400
    %v402 = vsel %vm398, %v395, -inf
    %403 = vmax.xlane.f32.xlu0 %v402
    %v404 = vpop.xlane.xlu0 %403
    %v405 = vsel %vm398, %v396, -inf
    %406 = vmax.xlane.f32.xlu0 %v405
    %v407 = vpop.xlane.xlu0 %406
    %v408 = vsel %vm398, %v397, -inf
    %409 = vmax.xlane.f32.xlu0 %v408
    %v410 = vpop.xlane.xlu0 %409
    %v411 = vsub.f32 %v394, %v401
    %v412 = vsub.f32 %v395, %v404
    %v413 = vsub.f32 %v396, %v407
    %v414 = vsub.f32 %v397, %v410
    %v415 = vmul.f32 %v411, 1.442695
    %v416 = vpow.pop %v415
    %v417 = vmul.f32 %v412, 1.442695
    %v418 = vpow.pop %v417
    %v419 = vmul.f32 %v413, 1.442695
    %v420 = vpow.pop %v419
    %v421 = vmul.f32 %v414, 1.442695
    %v422 = vpow.pop %v421
    %v423 = vsel %vm398, %v416, 0.0
    %424 = vadd.xlane.f32.xlu0 %v423
    %v425 = vpop.xlane.xlu0 %424
    %v426 = vsel %vm398, %v418, 0.0
    %427 = vadd.xlane.f32.xlu0 %v426
    %v428 = vpop.xlane.xlu0 %427
    %v429 = vsel %vm398, %v420, 0.0
    %430 = vadd.xlane.f32.xlu0 %v429
    %v431 = vpop.xlane.xlu0 %430
    %v432 = vsel %vm398, %v422, 0.0
    %433 = vadd.xlane.f32.xlu0 %v432
    %v434 = vpop.xlane.xlu0 %433
    %v435 = vrcp.pop %v425
    %v436 = vrcp.pop %v428
    %v437 = vrcp.pop %v431
    %v438 = vrcp.pop %v434
    %v439 = vmul.f32 %v416, %v435
    %v440 = vmul.f32 %v418, %v436
    %v441 = vmul.f32 %v420, %v437
    %v442 = vmul.f32 %v422, %v438
    %v443 = vpack.c.bf16 %v440, %v439
    %v444 = vpack.c.bf16 %v442, %v441
    %v445 = vpack.c.bf16 %v297, %v294
    %v446 = vpack.c.bf16 %v305, %v302
    %v448 = vsel %vm398, %v443, 0
    %450 = vmatprep.subr.bf16.mxu0 0
    %451 = vmatpush1.bf16.msra.mxu0 0
    %452 = vmatprep.subr.bf16.mxu0 0
    %453 = vmatpush1.bf16.msra.mxu0 0
    %454 = vmatprep.subr.bf16.mxu0 0
    %455 = vmatpush1.bf16.msra.mxu0 0
    %456 = vmatprep.subr.bf16.mxu0 0
    %457 = vmatpush1.bf16.msra.mxu0 0
    %458 = vmatprep.subr.bf16.mxu0 0
    %459 = vmatpush1.bf16.msra.mxu0 0
    %460 = vmatprep.subr.bf16.mxu0 0
    %461 = vmatpush1.bf16.msra.mxu0 0
    %462 = vmatprep.subr.bf16.mxu0 0
    %463 = vmatpush1.bf16.msra.mxu0 0
    %464 = vmatprep.subr.bf16.mxu0 0
    %465 = vmatpush1.bf16.msra.mxu0 %v445
    %466 = vmatprep.subr.bf16.mxu0 0
    %467 = vmatpush2.bf16.msra.mxu0 0
    %468 = vmatprep.subr.bf16.mxu0 0
    %469 = vmatpush2.bf16.msra.mxu0 0
    %470 = vmatprep.subr.bf16.mxu0 0
    %471 = vmatpush2.bf16.msra.mxu0 0
    %472 = vmatprep.subr.bf16.mxu0 0
    %473 = vmatpush2.bf16.msra.mxu0 0
    %474 = vmatprep.subr.bf16.mxu0 0
    %475 = vmatpush2.bf16.msra.mxu0 0
    %476 = vmatprep.subr.bf16.mxu0 0
    %477 = vmatpush2.bf16.msra.mxu0 0
    %478 = vmatprep.subr.bf16.mxu0 0
    %479 = vmatpush2.bf16.msra.mxu0 0
    %480 = vmatprep.subr.bf16.mxu0 0
    %481 = vmatpush2.bf16.msra.mxu0 0
    %482 = vmatprep.mubr.bf16.mxu0 0
    %483 = vmatmul.mubr.bf16.gmra.mxu0 %v448
    %v484 = vpop.f32.mrf.mxu0
    %v485 = vadd.f32 0.0, %v484
    %v486 = vpop.f32.mrf.mxu0
    %v487 = vpop.f32.mrf.mxu0
    %v488 = vadd.f32 0.0, %v487
    %v489 = vpop.f32.mrf.mxu0
    %490 = vdwg.mxu0
    %v492 = vsel %vm398, %v444, 0
    %494 = vmatprep.subr.bf16.mxu0 0
    %495 = vmatpush1.bf16.msra.mxu0 0
    %496 = vmatprep.subr.bf16.mxu0 0
    %497 = vmatpush1.bf16.msra.mxu0 0
    %498 = vmatprep.subr.bf16.mxu0 0
    %499 = vmatpush1.bf16.msra.mxu0 0
    %500 = vmatprep.subr.bf16.mxu0 0
    %501 = vmatpush1.bf16.msra.mxu0 0
    %502 = vmatprep.subr.bf16.mxu0 0
    %503 = vmatpush1.bf16.msra.mxu0 0
    %504 = vmatprep.subr.bf16.mxu0 0
    %505 = vmatpush1.bf16.msra.mxu0 0
    %506 = vmatprep.subr.bf16.mxu0 0
    %507 = vmatpush1.bf16.msra.mxu0 0
    %508 = vmatprep.subr.bf16.mxu0 0
    %509 = vmatpush1.bf16.msra.mxu0 %v446
    %510 = vmatprep.subr.bf16.mxu0 0
    %511 = vmatpush2.bf16.msra.mxu0 0
    %512 = vmatprep.subr.bf16.mxu0 0
    %513 = vmatpush2.bf16.msra.mxu0 0
    %514 = vmatprep.subr.bf16.mxu0 0
    %515 = vmatpush2.bf16.msra.mxu0 0
    %516 = vmatprep.subr.bf16.mxu0 0
    %517 = vmatpush2.bf16.msra.mxu0 0
    %518 = vmatprep.subr.bf16.mxu0 0
    %519 = vmatpush2.bf16.msra.mxu0 0
    %520 = vmatprep.subr.bf16.mxu0 0
    %521 = vmatpush2.bf16.msra.mxu0 0
    %522 = vmatprep.subr.bf16.mxu0 0
    %523 = vmatpush2.bf16.msra.mxu0 0
    %524 = vmatprep.subr.bf16.mxu0 0
    %525 = vmatpush2.bf16.msra.mxu0 0
    %526 = vmatprep.mubr.bf16.mxu0 0
    %527 = vmatmul.mubr.bf16.gmra.mxu0 %v492
    %v528 = vpop.f32.mrf.mxu0
    %v529 = vadd.f32 0.0, %v528
    %v530 = vpop.f32.mrf.mxu0
    %v531 = vpop.f32.mrf.mxu0
    %v532 = vadd.f32 0.0, %v531
    %v533 = vpop.f32.mrf.mxu0
    %534 = vdwg.mxu0
    %v535 = vld [vmem:[%s5] sm:$0xf]
    %v536 = vld [vmem:[%s5 + $0x4] sm:$0xf]
    %v537 = vld [vmem:[%s5 + $0x8] sm:$0xf]
    %v538 = vld [vmem:[%s5 + $0xc] sm:$0xf]
    %v539 = vld [vmem:[%s5 + $0x10] sm:$0xf]
    %v540 = vld [vmem:[%s5 + $0x14] sm:$0xf]
    %v541 = vld [vmem:[%s5 + $0x18] sm:$0xf]
    %v542 = vld [vmem:[%s5 + $0x1c] sm:$0xf]
    %v543 = vld [vmem:[%s5 + $0x20] sm:$0xf]
    %v544 = vld [vmem:[%s5 + $0x24] sm:$0xf]
    %v545 = vld [vmem:[%s5 + $0x28] sm:$0xf]
    %v546 = vld [vmem:[%s5 + $0x2c] sm:$0xf]
    %v547 = vld [vmem:[%s5 + $0x30] sm:$0xf]
    %v548 = vld [vmem:[%s5 + $0x34] sm:$0xf]
    %v549 = vld [vmem:[%s5 + $0x38] sm:$0xf]
    %v550 = vld [vmem:[%s5 + $0x3c] sm:$0xf]
    %v551 = vpack.c.bf16 %v488, %v485
    %v552 = vpack.c.bf16 %v532, %v529
    %v569 = vunpack.c.l.b16 %v535
    %v570 = vunpack.c.l.b16 %v536
    %v571 = vunpack.c.l.b16 %v537
    %v572 = vunpack.c.l.b16 %v538
    %v573 = vunpack.c.l.b16 %v539
    %v574 = vunpack.c.l.b16 %v540
    %v575 = vunpack.c.l.b16 %v541
    %v576 = vunpack.c.l.b16 %v542
    %v577 = vunpack.c.l.b16 %v543
    %v578 = vunpack.c.l.b16 %v544
    %v579 = vunpack.c.l.b16 %v545
    %v580 = vunpack.c.l.b16 %v546
    %v581 = vunpack.c.l.b16 %v547
    %v582 = vunpack.c.l.b16 %v548
    %v583 = vunpack.c.l.b16 %v549
    %v584 = vunpack.c.l.b16 %v550
    %v585 = vpack.c.b16 %v570, %v569
    %v586 = vpack.c.b16 %v572, %v571
    %v587 = vpack.c.b16 %v574, %v573
    %v588 = vpack.c.b16 %v576, %v575
    %v589 = vpack.c.b16 %v578, %v577
    %v590 = vpack.c.b16 %v580, %v579
    %v591 = vpack.c.b16 %v582, %v581
    %v592 = vpack.c.b16 %v584, %v583
    %601 = vmatprep.subr.bf16.mxu0 0
    %602 = vmatpush1.bf16.msra.mxu0 %v592
    %603 = vmatprep.subr.bf16.mxu0 0
    %604 = vmatpush1.bf16.msra.mxu0 %v591
    %605 = vmatprep.subr.bf16.mxu0 0
    %606 = vmatpush1.bf16.msra.mxu0 %v590
    %607 = vmatprep.subr.bf16.mxu0 0
    %608 = vmatpush1.bf16.msra.mxu0 %v589
    %609 = vmatprep.subr.bf16.mxu0 0
    %610 = vmatpush1.bf16.msra.mxu0 %v588
    %611 = vmatprep.subr.bf16.mxu0 0
    %612 = vmatpush1.bf16.msra.mxu0 %v587
    %613 = vmatprep.subr.bf16.mxu0 0
    %614 = vmatpush1.bf16.msra.mxu0 %v586
    %615 = vmatprep.subr.bf16.mxu0 0
    %616 = vmatpush1.bf16.msra.mxu0 %v585
    %617 = vmatprep.subr.bf16.mxu0 0
    %618 = vmatpush2.bf16.msra.mxu0 0
    %619 = vmatprep.subr.bf16.mxu0 0
    %620 = vmatpush2.bf16.msra.mxu0 0
    %621 = vmatprep.subr.bf16.mxu0 0
    %622 = vmatpush2.bf16.msra.mxu0 0
    %623 = vmatprep.subr.bf16.mxu0 0
    %624 = vmatpush2.bf16.msra.mxu0 0
    %625 = vmatprep.subr.bf16.mxu0 0
    %626 = vmatpush2.bf16.msra.mxu0 0
    %627 = vmatprep.subr.bf16.mxu0 0
    %628 = vmatpush2.bf16.msra.mxu0 0
    %629 = vmatprep.subr.bf16.mxu0 0
    %630 = vmatpush2.bf16.msra.mxu0 0
    %631 = vmatprep.subr.bf16.mxu0 0
    %632 = vmatpush2.bf16.msra.mxu0 0
    %633 = vmatprep.mubr.bf16.mxu0 0
    %634 = vmatmul.mubr.bf16.gmra.mxu0 %v551
    %v635 = vpop.f32.mrf.mxu0
    %v636 = vadd.f32 0.0, %v635
    %v637 = vpop.f32.mrf.mxu0
    %v638 = vpop.f32.mrf.mxu0
    %v639 = vadd.f32 0.0, %v638
    %v640 = vpop.f32.mrf.mxu0
    %641 = vmatprep.mubr.bf16.mxu0 0
    %642 = vmatmul.mubr.bf16.gmra.mxu0 %v552
    %v643 = vpop.f32.mrf.mxu0
    %v644 = vadd.f32 0.0, %v643
    %v645 = vpop.f32.mrf.mxu0
    %v646 = vpop.f32.mrf.mxu0
    %v647 = vadd.f32 0.0, %v646
    %v648 = vpop.f32.mrf.mxu0
    %649 = vdwg.mxu0
    %v650 = vadd.f32 %v36, %v636
    %v651 = vadd.f32 %v37, %v639
    %v652 = vadd.f32 %v38, %v644
    %v653 = vadd.f32 %v39, %v647
    %v654 = vpack.c.bf16 %v651, %v650
    %v655 = vpack.c.bf16 %v653, %v652
    %v660 = vunpack.c.l.b16 %v40
    %v661 = vunpack.c.l.b16 %v41
    %v662 = vunpack.c.l.b16 %v42
    %v663 = vunpack.c.l.b16 %v43
    %v664 = vpack.c.b16 %v661, %v660
    %v665 = vpack.c.b16 %v663, %v662
    %vm666 = vcmask 261120
    %v668 = vsel %vm666, %v664, 0
    %v671 = vsel %vm666, %v665, 0
    %673 = vmatprep.subr.bf16.mxu0 0
    %674 = vmatpush1.bf16.msra.mxu0 0
    %675 = vmatprep.subr.bf16.mxu0 0
    %676 = vmatpush1.bf16.msra.mxu0 0
    %677 = vmatprep.subr.bf16.mxu0 0
    %678 = vmatpush1.bf16.msra.mxu0 0
    %679 = vmatprep.subr.bf16.mxu0 0
    %680 = vmatpush1.bf16.msra.mxu0 0
    %681 = vmatprep.subr.bf16.mxu0 0
    %682 = vmatpush1.bf16.msra.mxu0 0
    %683 = vmatprep.subr.bf16.mxu0 0
    %684 = vmatpush1.bf16.msra.mxu0 0
    %685 = vmatprep.subr.bf16.mxu0 0
    %686 = vmatpush1.bf16.msra.mxu0 %v655
    %687 = vmatprep.subr.bf16.mxu0 0
    %688 = vmatpush1.bf16.msra.mxu0 %v654
    %689 = vmatprep.subr.bf16.mxu0 0
    %690 = vmatpush2.bf16.msra.mxu0 0
    %691 = vmatprep.subr.bf16.mxu0 0
    %692 = vmatpush2.bf16.msra.mxu0 0
    %693 = vmatprep.subr.bf16.mxu0 0
    %694 = vmatpush2.bf16.msra.mxu0 0
    %695 = vmatprep.subr.bf16.mxu0 0
    %696 = vmatpush2.bf16.msra.mxu0 0
    %697 = vmatprep.subr.bf16.mxu0 0
    %698 = vmatpush2.bf16.msra.mxu0 0
    %699 = vmatprep.subr.bf16.mxu0 0
    %700 = vmatpush2.bf16.msra.mxu0 0
    %701 = vmatprep.subr.bf16.mxu0 0
    %702 = vmatpush2.bf16.msra.mxu0 0
    %703 = vmatprep.subr.bf16.mxu0 0
    %704 = vmatpush2.bf16.msra.mxu0 0
    %705 = vmatprep.mubr.bf16.mxu0 0
    %706 = vmatmul.mubr.bf16.gmra.mxu0 %v668
    %v707 = vpop.f32.mrf.mxu0
    %v708 = vadd.f32 0.0, %v707
    %v709 = vpop.f32.mrf.mxu0
    %v710 = vpop.f32.mrf.mxu0
    %v711 = vadd.f32 0.0, %v710
    %v712 = vpop.f32.mrf.mxu0
    %713 = vmatprep.mubr.bf16.mxu0 0
    %714 = vmatmul.mubr.bf16.gmra.mxu0 %v671
    %v715 = vpop.f32.mrf.mxu0
    %v716 = vadd.f32 0.0, %v715
    %v717 = vpop.f32.mrf.mxu0
    %v718 = vpop.f32.mrf.mxu0
    %v719 = vadd.f32 0.0, %v718
    %v720 = vpop.f32.mrf.mxu0
    %721 = vdwg.mxu0
    %v722 = vsub.f32 %v650, %v708
    %v723 = vsub.f32 %v651, %v711
    %v724 = vsub.f32 %v652, %v716
    %v725 = vsub.f32 %v653, %v719
    %s726 = scalar_lea.vmem %s5, 64
    %v727 = vld [vmem:[%s726] sm:$0xf]
    %v728 = vld [vmem:[%s726 + $0x4] sm:$0xf]
    %v729 = vld [vmem:[%s726 + $0x8] sm:$0xf]
    %v730 = vld [vmem:[%s726 + $0xc] sm:$0xf]
    %v731 = vld [vmem:[%s726 + $0x10] sm:$0xf]
    %v732 = vld [vmem:[%s726 + $0x14] sm:$0xf]
    %v733 = vld [vmem:[%s726 + $0x18] sm:$0xf]
    %v734 = vld [vmem:[%s726 + $0x1c] sm:$0xf]
    %v735 = vld [vmem:[%s726 + $0x20] sm:$0xf]
    %v736 = vld [vmem:[%s726 + $0x24] sm:$0xf]
    %v737 = vld [vmem:[%s726 + $0x28] sm:$0xf]
    %v738 = vld [vmem:[%s726 + $0x2c] sm:$0xf]
    %v739 = vld [vmem:[%s726 + $0x30] sm:$0xf]
    %v740 = vld [vmem:[%s726 + $0x34] sm:$0xf]
    %v741 = vld [vmem:[%s726 + $0x38] sm:$0xf]
    %v742 = vld [vmem:[%s726 + $0x3c] sm:$0xf]
    %v743 = vpack.c.bf16 %v723, %v722
    %v744 = vpack.c.bf16 %v725, %v724
    %v761 = vunpack.c.l.b16 %v727
    %v762 = vunpack.c.l.b16 %v728
    %v763 = vunpack.c.l.b16 %v729
    %v764 = vunpack.c.l.b16 %v730
    %v765 = vunpack.c.l.b16 %v731
    %v766 = vunpack.c.l.b16 %v732
    %v767 = vunpack.c.l.b16 %v733
    %v768 = vunpack.c.l.b16 %v734
    %v769 = vunpack.c.l.b16 %v735
    %v770 = vunpack.c.l.b16 %v736
    %v771 = vunpack.c.l.b16 %v737
    %v772 = vunpack.c.l.b16 %v738
    %v773 = vunpack.c.l.b16 %v739
    %v774 = vunpack.c.l.b16 %v740
    %v775 = vunpack.c.l.b16 %v741
    %v776 = vunpack.c.l.b16 %v742
    %v777 = vpack.c.b16 %v762, %v761
    %v778 = vpack.c.b16 %v764, %v763
    %v779 = vpack.c.b16 %v766, %v765
    %v780 = vpack.c.b16 %v768, %v767
    %v781 = vpack.c.b16 %v770, %v769
    %v782 = vpack.c.b16 %v772, %v771
    %v783 = vpack.c.b16 %v774, %v773
    %v784 = vpack.c.b16 %v776, %v775
    %793 = vmatprep.subr.bf16.mxu0 0
    %794 = vmatpush1.bf16.msra.mxu0 %v784
    %795 = vmatprep.subr.bf16.mxu0 0
    %796 = vmatpush1.bf16.msra.mxu0 %v783
    %797 = vmatprep.subr.bf16.mxu0 0
    %798 = vmatpush1.bf16.msra.mxu0 %v782
    %799 = vmatprep.subr.bf16.mxu0 0
    %800 = vmatpush1.bf16.msra.mxu0 %v781
    %801 = vmatprep.subr.bf16.mxu0 0
    %802 = vmatpush1.bf16.msra.mxu0 %v780
    %803 = vmatprep.subr.bf16.mxu0 0
    %804 = vmatpush1.bf16.msra.mxu0 %v779
    %805 = vmatprep.subr.bf16.mxu0 0
    %806 = vmatpush1.bf16.msra.mxu0 %v778
    %807 = vmatprep.subr.bf16.mxu0 0
    %808 = vmatpush1.bf16.msra.mxu0 %v777
    %809 = vmatprep.subr.bf16.mxu0 0
    %810 = vmatpush2.bf16.msra.mxu0 0
    %811 = vmatprep.subr.bf16.mxu0 0
    %812 = vmatpush2.bf16.msra.mxu0 0
    %813 = vmatprep.subr.bf16.mxu0 0
    %814 = vmatpush2.bf16.msra.mxu0 0
    %815 = vmatprep.subr.bf16.mxu0 0
    %816 = vmatpush2.bf16.msra.mxu0 0
    %817 = vmatprep.subr.bf16.mxu0 0
    %818 = vmatpush2.bf16.msra.mxu0 0
    %819 = vmatprep.subr.bf16.mxu0 0
    %820 = vmatpush2.bf16.msra.mxu0 0
    %821 = vmatprep.subr.bf16.mxu0 0
    %822 = vmatpush2.bf16.msra.mxu0 0
    %823 = vmatprep.subr.bf16.mxu0 0
    %824 = vmatpush2.bf16.msra.mxu0 0
    %825 = vmatprep.mubr.bf16.mxu0 0
    %826 = vmatmul.mubr.bf16.gmra.mxu0 %v743
    %v827 = vpop.f32.mrf.mxu0
    %v828 = vadd.f32 0.0, %v827
    %v829 = vpop.f32.mrf.mxu0
    %v830 = vpop.f32.mrf.mxu0
    %v831 = vadd.f32 0.0, %v830
    %v832 = vpop.f32.mrf.mxu0
    %833 = vmatprep.mubr.bf16.mxu0 0
    %834 = vmatmul.mubr.bf16.gmra.mxu0 %v744
    %v835 = vpop.f32.mrf.mxu0
    %v836 = vadd.f32 0.0, %v835
    %v837 = vpop.f32.mrf.mxu0
    %v838 = vpop.f32.mrf.mxu0
    %v839 = vadd.f32 0.0, %v838
    %v840 = vpop.f32.mrf.mxu0
    %841 = vdwg.mxu0
    %v842 = vld [vmem:[%s1] sm:$0xff]
    %v843 = vld [vmem:[%s1 + $0x8] sm:$0xff]
    %v844 = vld [vmem:[%s1 + $0x10] sm:$0xff]
    %v845 = vld [vmem:[%s1 + $0x18] sm:$0xff]
    %v846 = vld [vmem:[%s1 + $0x20] sm:$0xff]
    %v847 = vld [vmem:[%s1 + $0x28] sm:$0xff]
    %v848 = vld [vmem:[%s4] sm:$0xff]
    %v849 = vld [vmem:[%s4 + $0x8] sm:$0xff]
    %v850 = vld [vmem:[%s4 + $0x10] sm:$0xff]
    %v851 = vld [vmem:[%s4 + $0x18] sm:$0xff]
    %v852 = vld [vmem:[%s4 + $0x20] sm:$0xff]
    %v853 = vld [vmem:[%s4 + $0x28] sm:$0xff]
    %v854 = vld [vmem:[%s4 + $0x30] sm:$0xff]
    %v855 = vld [vmem:[%s4 + $0x38] sm:$0xff]
    %v856 = vld [vmem:[%s4 + $0x40] sm:$0xff]
    %v857 = vld [vmem:[%s4 + $0x48] sm:$0xff]
    %v858 = vld [vmem:[%s4 + $0x50] sm:$0xff]
    %v859 = vld [vmem:[%s4 + $0x58] sm:$0xff]
    %v860 = vld [vmem:[%s4 + $0x60] sm:$0xff]
    %v861 = vld [vmem:[%s4 + $0x68] sm:$0xff]
    %v862 = vld [vmem:[%s4 + $0x70] sm:$0xff]
    %v863 = vld [vmem:[%s4 + $0x78] sm:$0xff]
    %v864 = vpack.c.bf16 %v843, %v842
    %v865 = vpack.c.bf16 %v845, %v844
    %v866 = vpack.c.bf16 %v847, %v846
    %v883 = vunpack.c.l.b16 %v848
    %v884 = vunpack.c.h.b16 %v848
    %v885 = vunpack.c.l.b16 %v849
    %v886 = vunpack.c.h.b16 %v849
    %v887 = vunpack.c.l.b16 %v850
    %v888 = vunpack.c.h.b16 %v850
    %v889 = vunpack.c.l.b16 %v851
    %v890 = vunpack.c.h.b16 %v851
    %v891 = vunpack.c.l.b16 %v852
    %v892 = vunpack.c.h.b16 %v852
    %v893 = vunpack.c.l.b16 %v853
    %v894 = vunpack.c.h.b16 %v853
    %v895 = vunpack.c.l.b16 %v854
    %v896 = vunpack.c.h.b16 %v854
    %v897 = vunpack.c.l.b16 %v855
    %v898 = vunpack.c.h.b16 %v855
    %v899 = vunpack.c.l.b16 %v856
    %v900 = vunpack.c.h.b16 %v856
    %v901 = vunpack.c.l.b16 %v857
    %v902 = vunpack.c.h.b16 %v857
    %v903 = vunpack.c.l.b16 %v858
    %v904 = vunpack.c.h.b16 %v858
    %v905 = vunpack.c.l.b16 %v859
    %v906 = vunpack.c.h.b16 %v859
    %v907 = vunpack.c.l.b16 %v860
    %v908 = vunpack.c.h.b16 %v860
    %v909 = vunpack.c.l.b16 %v861
    %v910 = vunpack.c.h.b16 %v861
    %v911 = vunpack.c.l.b16 %v862
    %v912 = vunpack.c.h.b16 %v862
    %v913 = vunpack.c.l.b16 %v863
    %v914 = vunpack.c.h.b16 %v863
    %v915 = vpack.c.b16 %v885, %v883
    %v916 = vpack.c.b16 %v886, %v884
    %v917 = vpack.c.b16 %v889, %v887
    %v918 = vpack.c.b16 %v890, %v888
    %v919 = vpack.c.b16 %v893, %v891
    %v920 = vpack.c.b16 %v894, %v892
    %v921 = vpack.c.b16 %v897, %v895
    %v922 = vpack.c.b16 %v898, %v896
    %v923 = vpack.c.b16 %v901, %v899
    %v924 = vpack.c.b16 %v902, %v900
    %v925 = vpack.c.b16 %v905, %v903
    %v926 = vpack.c.b16 %v906, %v904
    %v927 = vpack.c.b16 %v909, %v907
    %v928 = vpack.c.b16 %v910, %v908
    %v929 = vpack.c.b16 %v913, %v911
    %v930 = vpack.c.b16 %v914, %v912
    %947 = vmatprep.subr.bf16.mxu0 %v930
    %948 = vmatpush1.bf16.msra.mxu0 %v929
    %949 = vmatprep.subr.bf16.mxu0 %v928
    %950 = vmatpush1.bf16.msra.mxu0 %v927
    %951 = vmatprep.subr.bf16.mxu0 %v926
    %952 = vmatpush1.bf16.msra.mxu0 %v925
    %953 = vmatprep.subr.bf16.mxu0 %v924
    %954 = vmatpush1.bf16.msra.mxu0 %v923
    %955 = vmatprep.subr.bf16.mxu0 %v922
    %956 = vmatpush1.bf16.msra.mxu0 %v921
    %957 = vmatprep.subr.bf16.mxu0 %v920
    %958 = vmatpush1.bf16.msra.mxu0 %v919
    %959 = vmatprep.subr.bf16.mxu0 %v918
    %960 = vmatpush1.bf16.msra.mxu0 %v917
    %961 = vmatprep.subr.bf16.mxu0 %v916
    %962 = vmatpush1.bf16.msra.mxu0 %v915
    %963 = vmatprep.subr.bf16.mxu0 0
    %964 = vmatpush2.bf16.msra.mxu0 0
    %965 = vmatprep.subr.bf16.mxu0 0
    %966 = vmatpush2.bf16.msra.mxu0 0
    %967 = vmatprep.subr.bf16.mxu0 0
    %968 = vmatpush2.bf16.msra.mxu0 0
    %969 = vmatprep.subr.bf16.mxu0 0
    %970 = vmatpush2.bf16.msra.mxu0 0
    %971 = vmatprep.subr.bf16.mxu0 0
    %972 = vmatpush2.bf16.msra.mxu0 0
    %973 = vmatprep.subr.bf16.mxu0 0
    %974 = vmatpush2.bf16.msra.mxu0 0
    %975 = vmatprep.subr.bf16.mxu0 0
    %976 = vmatpush2.bf16.msra.mxu0 0
    %977 = vmatprep.subr.bf16.mxu0 0
    %978 = vmatpush2.bf16.msra.mxu0 0
    %979 = vmatprep.mubr.bf16.mxu0 0
    %980 = vmatmul.mubr.bf16.gmra.mxu0 %v864
    %v981 = vpop.f32.mrf.mxu0
    %v982 = vadd.f32 0.0, %v981
    %v983 = vpop.f32.mrf.mxu0
    %v984 = vadd.f32 0.0, %v983
    %v985 = vpop.f32.mrf.mxu0
    %v986 = vadd.f32 0.0, %v985
    %v987 = vpop.f32.mrf.mxu0
    %v988 = vadd.f32 0.0, %v987
    %989 = vmatprep.mubr.bf16.mxu0 0
    %990 = vmatmul.mubr.bf16.gmra.mxu0 %v865
    %v991 = vpop.f32.mrf.mxu0
    %v992 = vadd.f32 0.0, %v991
    %v993 = vpop.f32.mrf.mxu0
    %v994 = vadd.f32 0.0, %v993
    %v995 = vpop.f32.mrf.mxu0
    %v996 = vadd.f32 0.0, %v995
    %v997 = vpop.f32.mrf.mxu0
    %v998 = vadd.f32 0.0, %v997
    %999 = vmatprep.mubr.bf16.mxu0 0
    %1000 = vmatmul.mubr.bf16.gmra.mxu0 %v866
    %v1001 = vpop.f32.mrf.mxu0
    %v1002 = vadd.f32 0.0, %v1001
    %v1003 = vpop.f32.mrf.mxu0
    %v1004 = vadd.f32 0.0, %v1003
    %v1005 = vpop.f32.mrf.mxu0
    %v1006 = vadd.f32 0.0, %v1005
    %v1007 = vpop.f32.mrf.mxu0
    %v1008 = vadd.f32 0.0, %v1007
    %1009 = vdwg.mxu0
    %v1010 = vpack.c.bf16 %v831, %v828
    %v1011 = vpack.c.bf16 %v839, %v836
    %v1012 = vpack.c.bf16 %v986, %v982
    %v1013 = vpack.c.bf16 %v992, %v992
    %v1014 = vpack.c.bf16 %v1002, %v996
    %v1015 = vpack.c.bf16 %v1006, %v1006
    %1016 = vmatprep.subr.bf16.mxu0 0
    %1017 = vmatpush1.bf16.xpose.msra.mxu0 0
    %1018 = vmatprep.subr.bf16.mxu0 0
    %1019 = vmatpush1.bf16.xpose.msra.mxu0 0
    %1020 = vmatprep.subr.bf16.mxu0 0
    %1021 = vmatpush1.bf16.xpose.msra.mxu0 0
    %1022 = vmatprep.subr.bf16.mxu0 0
    %1023 = vmatpush1.bf16.xpose.msra.mxu0 0
    %1024 = vmatprep.subr.bf16.mxu0 0
    %1025 = vmatpush1.bf16.xpose.msra.mxu0 0
    %1026 = vmatprep.subr.bf16.mxu0 0
    %1027 = vmatpush1.bf16.xpose.msra.mxu0 0
    %1028 = vmatprep.subr.bf16.mxu0 0
    %1029 = vmatpush1.bf16.xpose.msra.mxu0 %v1013
    %1030 = vmatprep.subr.bf16.mxu0 0
    %1031 = vmatpush1.bf16.xpose.msra.mxu0 %v1012
    %1032 = vmatprep.subr.bf16.mxu0 0
    %1033 = vmatpush2.bf16.xpose.msra.mxu0 0
    %1034 = vmatprep.subr.bf16.mxu0 0
    %1035 = vmatpush2.bf16.xpose.msra.mxu0 0
    %1036 = vmatprep.subr.bf16.mxu0 0
    %1037 = vmatpush2.bf16.xpose.msra.mxu0 0
    %1038 = vmatprep.subr.bf16.mxu0 0
    %1039 = vmatpush2.bf16.xpose.msra.mxu0 0
    %1040 = vmatprep.subr.bf16.mxu0 0
    %1041 = vmatpush2.bf16.xpose.msra.mxu0 0
    %1042 = vmatprep.subr.bf16.mxu0 0
    %1043 = vmatpush2.bf16.xpose.msra.mxu0 0
    %1044 = vmatprep.subr.bf16.mxu0 0
    %1045 = vmatpush2.bf16.xpose.msra.mxu0 0
    %1046 = vmatprep.subr.bf16.mxu0 0
    %1047 = vmatpush2.bf16.xpose.msra.mxu0 0
    %1048 = vmatprep.mubr.bf16.mxu0 0
    %1049 = vmatmul.mubr.bf16.gmra.mxu0 %v1010
    %v1050 = vpop.f32.mrf.mxu0
    %v1051 = vadd.f32 0.0, %v1050
    %v1052 = vpop.f32.mrf.mxu0
    %v1053 = vpop.f32.mrf.mxu0
    %v1054 = vadd.f32 0.0, %v1053
    %v1055 = vpop.f32.mrf.mxu0
    %1056 = vdwg.mxu0
    %1057 = vmatprep.subr.bf16.mxu0 0
    %1058 = vmatpush1.bf16.xpose.msra.mxu0 0
    %1059 = vmatprep.subr.bf16.mxu0 0
    %1060 = vmatpush1.bf16.xpose.msra.mxu0 0
    %1061 = vmatprep.subr.bf16.mxu0 0
    %1062 = vmatpush1.bf16.xpose.msra.mxu0 0
    %1063 = vmatprep.subr.bf16.mxu0 0
    %1064 = vmatpush1.bf16.xpose.msra.mxu0 0
    %1065 = vmatprep.subr.bf16.mxu0 0
    %1066 = vmatpush1.bf16.xpose.msra.mxu0 0
    %1067 = vmatprep.subr.bf16.mxu0 0
    %1068 = vmatpush1.bf16.xpose.msra.mxu0 0
    %1069 = vmatprep.subr.bf16.mxu0 0
    %1070 = vmatpush1.bf16.xpose.msra.mxu0 %v1015
    %1071 = vmatprep.subr.bf16.mxu0 0
    %1072 = vmatpush1.bf16.xpose.msra.mxu0 %v1014
    %1073 = vmatprep.subr.bf16.mxu0 0
    %1074 = vmatpush2.bf16.xpose.msra.mxu0 0
    %1075 = vmatprep.subr.bf16.mxu0 0
    %1076 = vmatpush2.bf16.xpose.msra.mxu0 0
    %1077 = vmatprep.subr.bf16.mxu0 0
    %1078 = vmatpush2.bf16.xpose.msra.mxu0 0
    %1079 = vmatprep.subr.bf16.mxu0 0
    %1080 = vmatpush2.bf16.xpose.msra.mxu0 0
    %1081 = vmatprep.subr.bf16.mxu0 0
    %1082 = vmatpush2.bf16.xpose.msra.mxu0 0
    %1083 = vmatprep.subr.bf16.mxu0 0
    %1084 = vmatpush2.bf16.xpose.msra.mxu0 0
    %1085 = vmatprep.subr.bf16.mxu0 0
    %1086 = vmatpush2.bf16.xpose.msra.mxu0 0
    %1087 = vmatprep.subr.bf16.mxu0 0
    %1088 = vmatpush2.bf16.xpose.msra.mxu0 0
    %1089 = vmatprep.mubr.bf16.mxu0 0
    %1090 = vmatmul.mubr.bf16.gmra.mxu0 %v1011
    %v1091 = vpop.f32.mrf.mxu0
    %v1092 = vadd.f32 0.0, %v1091
    %v1093 = vpop.f32.mrf.mxu0
    %v1094 = vpop.f32.mrf.mxu0
    %v1095 = vadd.f32 0.0, %v1094
    %v1096 = vpop.f32.mrf.mxu0
    %1097 = vdwg.mxu0
    %v1098 = vmul.f32 %v1051, 0.17677669
    %v1099 = vmul.f32 %v1054, 0.17677669
    %v1100 = vmul.f32 %v1092, 0.17677669
    %v1101 = vmul.f32 %v1095, 0.17677669
    %vm1102 = vcmask 195584
    %v1103 = vsel %vm1102, %v1098, -inf
    %1104 = vmax.xlane.f32.xlu0 %v1103
    %v1105 = vpop.xlane.xlu0 %1104
    %v1106 = vsel %vm1102, %v1099, -inf
    %1107 = vmax.xlane.f32.xlu0 %v1106
    %v1108 = vpop.xlane.xlu0 %1107
    %v1109 = vsel %vm1102, %v1100, -inf
    %1110 = vmax.xlane.f32.xlu0 %v1109
    %v1111 = vpop.xlane.xlu0 %1110
    %v1112 = vsel %vm1102, %v1101, -inf
    %1113 = vmax.xlane.f32.xlu0 %v1112
    %v1114 = vpop.xlane.xlu0 %1113
    %v1115 = vsub.f32 %v1098, %v1105
    %v1116 = vsub.f32 %v1099, %v1108
    %v1117 = vsub.f32 %v1100, %v1111
    %v1118 = vsub.f32 %v1101, %v1114
    %v1119 = vmul.f32 %v1115, 1.442695
    %v1120 = vpow.pop %v1119
    %v1121 = vmul.f32 %v1116, 1.442695
    %v1122 = vpow.pop %v1121
    %v1123 = vmul.f32 %v1117, 1.442695
    %v1124 = vpow.pop %v1123
    %v1125 = vmul.f32 %v1118, 1.442695
    %v1126 = vpow.pop %v1125
    %v1127 = vsel %vm1102, %v1120, 0.0
    %1128 = vadd.xlane.f32.xlu0 %v1127
    %v1129 = vpop.xlane.xlu0 %1128
    %v1130 = vsel %vm1102, %v1122, 0.0
    %1131 = vadd.xlane.f32.xlu0 %v1130
    %v1132 = vpop.xlane.xlu0 %1131
    %v1133 = vsel %vm1102, %v1124, 0.0
    %1134 = vadd.xlane.f32.xlu0 %v1133
    %v1135 = vpop.xlane.xlu0 %1134
    %v1136 = vsel %vm1102, %v1126, 0.0
    %1137 = vadd.xlane.f32.xlu0 %v1136
    %v1138 = vpop.xlane.xlu0 %1137
    %v1139 = vrcp.pop %v1129
    %v1140 = vrcp.pop %v1132
    %v1141 = vrcp.pop %v1135
    %v1142 = vrcp.pop %v1138
    %v1143 = vmul.f32 %v1120, %v1139
    %v1144 = vmul.f32 %v1122, %v1140
    %v1145 = vmul.f32 %v1124, %v1141
    %v1146 = vmul.f32 %v1126, %v1142
    %v1147 = vpack.c.bf16 %v1144, %v1143
    %v1148 = vpack.c.bf16 %v1146, %v1145
    %v1149 = vpack.c.bf16 %v988, %v984
    %v1150 = vpack.c.bf16 %v994, %v994
    %v1151 = vpack.c.bf16 %v1004, %v998
    %v1152 = vpack.c.bf16 %v1008, %v1008
    %v1154 = vsel %vm1102, %v1147, 0
    %vm1156 = vcmask 1043456
    %v1158 = vsel %vm1156, %v1150, 0
    %1160 = vmatprep.subr.bf16.mxu0 0
    %1161 = vmatpush1.bf16.msra.mxu0 0
    %1162 = vmatprep.subr.bf16.mxu0 0
    %1163 = vmatpush1.bf16.msra.mxu0 0
    %1164 = vmatprep.subr.bf16.mxu0 0
    %1165 = vmatpush1.bf16.msra.mxu0 0
    %1166 = vmatprep.subr.bf16.mxu0 0
    %1167 = vmatpush1.bf16.msra.mxu0 0
    %1168 = vmatprep.subr.bf16.mxu0 0
    %1169 = vmatpush1.bf16.msra.mxu0 0
    %1170 = vmatprep.subr.bf16.mxu0 0
    %1171 = vmatpush1.bf16.msra.mxu0 0
    %1172 = vmatprep.subr.bf16.mxu0 0
    %1173 = vmatpush1.bf16.msra.mxu0 %v1158
    %1174 = vmatprep.subr.bf16.mxu0 0
    %1175 = vmatpush1.bf16.msra.mxu0 %v1149
    %1176 = vmatprep.subr.bf16.mxu0 0
    %1177 = vmatpush2.bf16.msra.mxu0 0
    %1178 = vmatprep.subr.bf16.mxu0 0
    %1179 = vmatpush2.bf16.msra.mxu0 0
    %1180 = vmatprep.subr.bf16.mxu0 0
    %1181 = vmatpush2.bf16.msra.mxu0 0
    %1182 = vmatprep.subr.bf16.mxu0 0
    %1183 = vmatpush2.bf16.msra.mxu0 0
    %1184 = vmatprep.subr.bf16.mxu0 0
    %1185 = vmatpush2.bf16.msra.mxu0 0
    %1186 = vmatprep.subr.bf16.mxu0 0
    %1187 = vmatpush2.bf16.msra.mxu0 0
    %1188 = vmatprep.subr.bf16.mxu0 0
    %1189 = vmatpush2.bf16.msra.mxu0 0
    %1190 = vmatprep.subr.bf16.mxu0 0
    %1191 = vmatpush2.bf16.msra.mxu0 0
    %1192 = vmatprep.mubr.bf16.mxu0 0
    %1193 = vmatmul.mubr.bf16.gmra.mxu0 %v1154
    %v1194 = vpop.f32.mrf.mxu0
    %v1195 = vadd.f32 0.0, %v1194
    %v1196 = vpop.f32.mrf.mxu0
    %v1197 = vpop.f32.mrf.mxu0
    %v1198 = vadd.f32 0.0, %v1197
    %v1199 = vpop.f32.mrf.mxu0
    %1200 = vdwg.mxu0
    %v1202 = vsel %vm1102, %v1148, 0
    %v1205 = vsel %vm1156, %v1152, 0
    %1207 = vmatprep.subr.bf16.mxu0 0
    %1208 = vmatpush1.bf16.msra.mxu0 0
    %1209 = vmatprep.subr.bf16.mxu0 0
    %1210 = vmatpush1.bf16.msra.mxu0 0
    %1211 = vmatprep.subr.bf16.mxu0 0
    %1212 = vmatpush1.bf16.msra.mxu0 0
    %1213 = vmatprep.subr.bf16.mxu0 0
    %1214 = vmatpush1.bf16.msra.mxu0 0
    %1215 = vmatprep.subr.bf16.mxu0 0
    %1216 = vmatpush1.bf16.msra.mxu0 0
    %1217 = vmatprep.subr.bf16.mxu0 0
    %1218 = vmatpush1.bf16.msra.mxu0 0
    %1219 = vmatprep.subr.bf16.mxu0 0
    %1220 = vmatpush1.bf16.msra.mxu0 %v1205
    %1221 = vmatprep.subr.bf16.mxu0 0
    %1222 = vmatpush1.bf16.msra.mxu0 %v1151
    %1223 = vmatprep.subr.bf16.mxu0 0
    %1224 = vmatpush2.bf16.msra.mxu0 0
    %1225 = vmatprep.subr.bf16.mxu0 0
    %1226 = vmatpush2.bf16.msra.mxu0 0
    %1227 = vmatprep.subr.bf16.mxu0 0
    %1228 = vmatpush2.bf16.msra.mxu0 0
    %1229 = vmatprep.subr.bf16.mxu0 0
    %1230 = vmatpush2.bf16.msra.mxu0 0
    %1231 = vmatprep.subr.bf16.mxu0 0
    %1232 = vmatpush2.bf16.msra.mxu0 0
    %1233 = vmatprep.subr.bf16.mxu0 0
    %1234 = vmatpush2.bf16.msra.mxu0 0
    %1235 = vmatprep.subr.bf16.mxu0 0
    %1236 = vmatpush2.bf16.msra.mxu0 0
    %1237 = vmatprep.subr.bf16.mxu0 0
    %1238 = vmatpush2.bf16.msra.mxu0 0
    %1239 = vmatprep.mubr.bf16.mxu0 0
    %1240 = vmatmul.mubr.bf16.gmra.mxu0 %v1202
    %v1241 = vpop.f32.mrf.mxu0
    %v1242 = vadd.f32 0.0, %v1241
    %v1243 = vpop.f32.mrf.mxu0
    %v1244 = vpop.f32.mrf.mxu0
    %v1245 = vadd.f32 0.0, %v1244
    %v1246 = vpop.f32.mrf.mxu0
    %1247 = vdwg.mxu0
    %s1248 = scalar_lea.vmem %s5, 128
    %v1249 = vld [vmem:[%s1248] sm:$0xf]
    %v1250 = vld [vmem:[%s1248 + $0x4] sm:$0xf]
    %v1251 = vld [vmem:[%s1248 + $0x8] sm:$0xf]
    %v1252 = vld [vmem:[%s1248 + $0xc] sm:$0xf]
    %v1253 = vld [vmem:[%s1248 + $0x10] sm:$0xf]
    %v1254 = vld [vmem:[%s1248 + $0x14] sm:$0xf]
    %v1255 = vld [vmem:[%s1248 + $0x18] sm:$0xf]
    %v1256 = vld [vmem:[%s1248 + $0x1c] sm:$0xf]
    %v1257 = vld [vmem:[%s1248 + $0x20] sm:$0xf]
    %v1258 = vld [vmem:[%s1248 + $0x24] sm:$0xf]
    %v1259 = vld [vmem:[%s1248 + $0x28] sm:$0xf]
    %v1260 = vld [vmem:[%s1248 + $0x2c] sm:$0xf]
    %v1261 = vld [vmem:[%s1248 + $0x30] sm:$0xf]
    %v1262 = vld [vmem:[%s1248 + $0x34] sm:$0xf]
    %v1263 = vld [vmem:[%s1248 + $0x38] sm:$0xf]
    %v1264 = vld [vmem:[%s1248 + $0x3c] sm:$0xf]
    %v1265 = vpack.c.bf16 %v1198, %v1195
    %v1266 = vpack.c.bf16 %v1245, %v1242
    %v1283 = vunpack.c.l.b16 %v1249
    %v1284 = vunpack.c.l.b16 %v1250
    %v1285 = vunpack.c.l.b16 %v1251
    %v1286 = vunpack.c.l.b16 %v1252
    %v1287 = vunpack.c.l.b16 %v1253
    %v1288 = vunpack.c.l.b16 %v1254
    %v1289 = vunpack.c.l.b16 %v1255
    %v1290 = vunpack.c.l.b16 %v1256
    %v1291 = vunpack.c.l.b16 %v1257
    %v1292 = vunpack.c.l.b16 %v1258
    %v1293 = vunpack.c.l.b16 %v1259
    %v1294 = vunpack.c.l.b16 %v1260
    %v1295 = vunpack.c.l.b16 %v1261
    %v1296 = vunpack.c.l.b16 %v1262
    %v1297 = vunpack.c.l.b16 %v1263
    %v1298 = vunpack.c.l.b16 %v1264
    %v1299 = vpack.c.b16 %v1284, %v1283
    %v1300 = vpack.c.b16 %v1286, %v1285
    %v1301 = vpack.c.b16 %v1288, %v1287
    %v1302 = vpack.c.b16 %v1290, %v1289
    %v1303 = vpack.c.b16 %v1292, %v1291
    %v1304 = vpack.c.b16 %v1294, %v1293
    %v1305 = vpack.c.b16 %v1296, %v1295
    %v1306 = vpack.c.b16 %v1298, %v1297
    %1315 = vmatprep.subr.bf16.mxu0 0
    %1316 = vmatpush1.bf16.msra.mxu0 %v1306
    %1317 = vmatprep.subr.bf16.mxu0 0
    %1318 = vmatpush1.bf16.msra.mxu0 %v1305
    %1319 = vmatprep.subr.bf16.mxu0 0
    %1320 = vmatpush1.bf16.msra.mxu0 %v1304
    %1321 = vmatprep.subr.bf16.mxu0 0
    %1322 = vmatpush1.bf16.msra.mxu0 %v1303
    %1323 = vmatprep.subr.bf16.mxu0 0
    %1324 = vmatpush1.bf16.msra.mxu0 %v1302
    %1325 = vmatprep.subr.bf16.mxu0 0
    %1326 = vmatpush1.bf16.msra.mxu0 %v1301
    %1327 = vmatprep.subr.bf16.mxu0 0
    %1328 = vmatpush1.bf16.msra.mxu0 %v1300
    %1329 = vmatprep.subr.bf16.mxu0 0
    %1330 = vmatpush1.bf16.msra.mxu0 %v1299
    %1331 = vmatprep.subr.bf16.mxu0 0
    %1332 = vmatpush2.bf16.msra.mxu0 0
    %1333 = vmatprep.subr.bf16.mxu0 0
    %1334 = vmatpush2.bf16.msra.mxu0 0
    %1335 = vmatprep.subr.bf16.mxu0 0
    %1336 = vmatpush2.bf16.msra.mxu0 0
    %1337 = vmatprep.subr.bf16.mxu0 0
    %1338 = vmatpush2.bf16.msra.mxu0 0
    %1339 = vmatprep.subr.bf16.mxu0 0
    %1340 = vmatpush2.bf16.msra.mxu0 0
    %1341 = vmatprep.subr.bf16.mxu0 0
    %1342 = vmatpush2.bf16.msra.mxu0 0
    %1343 = vmatprep.subr.bf16.mxu0 0
    %1344 = vmatpush2.bf16.msra.mxu0 0
    %1345 = vmatprep.subr.bf16.mxu0 0
    %1346 = vmatpush2.bf16.msra.mxu0 0
    %1347 = vmatprep.mubr.bf16.mxu0 0
    %1348 = vmatmul.mubr.bf16.gmra.mxu0 %v1265
    %v1349 = vpop.f32.mrf.mxu0
    %v1350 = vadd.f32 0.0, %v1349
    %v1351 = vpop.f32.mrf.mxu0
    %v1352 = vpop.f32.mrf.mxu0
    %v1353 = vadd.f32 0.0, %v1352
    %v1354 = vpop.f32.mrf.mxu0
    %1355 = vmatprep.mubr.bf16.mxu0 0
    %1356 = vmatmul.mubr.bf16.gmra.mxu0 %v1266
    %v1357 = vpop.f32.mrf.mxu0
    %v1358 = vadd.f32 0.0, %v1357
    %v1359 = vpop.f32.mrf.mxu0
    %v1360 = vpop.f32.mrf.mxu0
    %v1361 = vadd.f32 0.0, %v1360
    %v1362 = vpop.f32.mrf.mxu0
    %1363 = vdwg.mxu0
    %v1364 = vadd.f32 %v722, %v1350
    %v1365 = vadd.f32 %v723, %v1353
    %v1366 = vadd.f32 %v724, %v1358
    %v1367 = vadd.f32 %v725, %v1361
    %v1368 = vpack.c.bf16 %v1365, %v1364
    %v1369 = vpack.c.bf16 %v1367, %v1366
    %1370 = vmatprep.subr.bf16.mxu0 0
    %1371 = vmatpush1.bf16.msra.mxu0 0
    %1372 = vmatprep.subr.bf16.mxu0 0
    %1373 = vmatpush1.bf16.msra.mxu0 0
    %1374 = vmatprep.subr.bf16.mxu0 0
    %1375 = vmatpush1.bf16.msra.mxu0 0
    %1376 = vmatprep.subr.bf16.mxu0 0
    %1377 = vmatpush1.bf16.msra.mxu0 0
    %1378 = vmatprep.subr.bf16.mxu0 0
    %1379 = vmatpush1.bf16.msra.mxu0 0
    %1380 = vmatprep.subr.bf16.mxu0 0
    %1381 = vmatpush1.bf16.msra.mxu0 0
    %1382 = vmatprep.subr.bf16.mxu0 0
    %1383 = vmatpush1.bf16.msra.mxu0 %v1369
    %1384 = vmatprep.subr.bf16.mxu0 0
    %1385 = vmatpush1.bf16.msra.mxu0 %v1368
    %1386 = vmatprep.subr.bf16.mxu0 0
    %1387 = vmatpush2.bf16.msra.mxu0 0
    %1388 = vmatprep.subr.bf16.mxu0 0
    %1389 = vmatpush2.bf16.msra.mxu0 0
    %1390 = vmatprep.subr.bf16.mxu0 0
    %1391 = vmatpush2.bf16.msra.mxu0 0
    %1392 = vmatprep.subr.bf16.mxu0 0
    %1393 = vmatpush2.bf16.msra.mxu0 0
    %1394 = vmatprep.subr.bf16.mxu0 0
    %1395 = vmatpush2.bf16.msra.mxu0 0
    %1396 = vmatprep.subr.bf16.mxu0 0
    %1397 = vmatpush2.bf16.msra.mxu0 0
    %1398 = vmatprep.subr.bf16.mxu0 0
    %1399 = vmatpush2.bf16.msra.mxu0 0
    %1400 = vmatprep.subr.bf16.mxu0 0
    %1401 = vmatpush2.bf16.msra.mxu0 0
    %1402 = vmatprep.mubr.bf16.mxu0 0
    %1403 = vmatmul.mubr.bf16.gmra.mxu0 %v668
    %v1404 = vpop.f32.mrf.mxu0
    %v1405 = vadd.f32 0.0, %v1404
    %v1406 = vpop.f32.mrf.mxu0
    %v1407 = vpop.f32.mrf.mxu0
    %v1408 = vadd.f32 0.0, %v1407
    %v1409 = vpop.f32.mrf.mxu0
    %1410 = vmatprep.mubr.bf16.mxu0 0
    %1411 = vmatmul.mubr.bf16.gmra.mxu0 %v671
    %v1412 = vpop.f32.mrf.mxu0
    %v1413 = vadd.f32 0.0, %v1412
    %v1414 = vpop.f32.mrf.mxu0
    %v1415 = vpop.f32.mrf.mxu0
    %v1416 = vadd.f32 0.0, %v1415
    %v1417 = vpop.f32.mrf.mxu0
    %1418 = vdwg.mxu0
    %v1419 = vsub.f32 %v1364, %v1405
    %v1420 = vsub.f32 %v1365, %v1408
    %v1421 = vsub.f32 %v1366, %v1413
    %v1422 = vsub.f32 %v1367, %v1416
    %v1423 = vadd.f32 %v708, %v1405
    %v1424 = vadd.f32 %v711, %v1408
    %v1425 = vadd.f32 %v716, %v1413
    %v1426 = vadd.f32 %v719, %v1416
    %v1427 = vld [vmem:[%s6] sm:$0xf]
    %v1428 = vld [vmem:[%s6 + $0x4] sm:$0xf]
    %v1429 = vld [vmem:[%s6 + $0x8] sm:$0xf]
    %v1430 = vld [vmem:[%s6 + $0xc] sm:$0xf]
    %v1431 = vld [vmem:[%s6 + $0x10] sm:$0xf]
    %v1432 = vld [vmem:[%s6 + $0x14] sm:$0xf]
    %v1433 = vld [vmem:[%s6 + $0x18] sm:$0xf]
    %v1434 = vld [vmem:[%s6 + $0x1c] sm:$0xf]
    %v1435 = vld [vmem:[%s6 + $0x20] sm:$0xf]
    %v1436 = vld [vmem:[%s6 + $0x24] sm:$0xf]
    %v1437 = vld [vmem:[%s6 + $0x28] sm:$0xf]
    %v1438 = vld [vmem:[%s6 + $0x2c] sm:$0xf]
    %v1439 = vld [vmem:[%s6 + $0x30] sm:$0xf]
    %v1440 = vld [vmem:[%s6 + $0x34] sm:$0xf]
    %v1441 = vld [vmem:[%s6 + $0x38] sm:$0xf]
    %v1442 = vld [vmem:[%s6 + $0x3c] sm:$0xf]
    %v1443 = vpack.c.bf16 %v1420, %v1419
    %v1444 = vpack.c.bf16 %v1422, %v1421
    %v1461 = vunpack.c.l.b16 %v1427
    %v1462 = vunpack.c.l.b16 %v1428
    %v1463 = vunpack.c.l.b16 %v1429
    %v1464 = vunpack.c.l.b16 %v1430
    %v1465 = vunpack.c.l.b16 %v1431
    %v1466 = vunpack.c.l.b16 %v1432
    %v1467 = vunpack.c.l.b16 %v1433
    %v1468 = vunpack.c.l.b16 %v1434
    %v1469 = vunpack.c.l.b16 %v1435
    %v1470 = vunpack.c.l.b16 %v1436
    %v1471 = vunpack.c.l.b16 %v1437
    %v1472 = vunpack.c.l.b16 %v1438
    %v1473 = vunpack.c.l.b16 %v1439
    %v1474 = vunpack.c.l.b16 %v1440
    %v1475 = vunpack.c.l.b16 %v1441
    %v1476 = vunpack.c.l.b16 %v1442
    %v1477 = vpack.c.b16 %v1462, %v1461
    %v1478 = vpack.c.b16 %v1464, %v1463
    %v1479 = vpack.c.b16 %v1466, %v1465
    %v1480 = vpack.c.b16 %v1468, %v1467
    %v1481 = vpack.c.b16 %v1470, %v1469
    %v1482 = vpack.c.b16 %v1472, %v1471
    %v1483 = vpack.c.b16 %v1474, %v1473
    %v1484 = vpack.c.b16 %v1476, %v1475
    %1493 = vmatprep.subr.bf16.mxu0 0
    %1494 = vmatpush1.bf16.msra.mxu0 %v1484
    %1495 = vmatprep.subr.bf16.mxu0 0
    %1496 = vmatpush1.bf16.msra.mxu0 %v1483
    %1497 = vmatprep.subr.bf16.mxu0 0
    %1498 = vmatpush1.bf16.msra.mxu0 %v1482
    %1499 = vmatprep.subr.bf16.mxu0 0
    %1500 = vmatpush1.bf16.msra.mxu0 %v1481
    %1501 = vmatprep.subr.bf16.mxu0 0
    %1502 = vmatpush1.bf16.msra.mxu0 %v1480
    %1503 = vmatprep.subr.bf16.mxu0 0
    %1504 = vmatpush1.bf16.msra.mxu0 %v1479
    %1505 = vmatprep.subr.bf16.mxu0 0
    %1506 = vmatpush1.bf16.msra.mxu0 %v1478
    %1507 = vmatprep.subr.bf16.mxu0 0
    %1508 = vmatpush1.bf16.msra.mxu0 %v1477
    %1509 = vmatprep.subr.bf16.mxu0 0
    %1510 = vmatpush2.bf16.msra.mxu0 0
    %1511 = vmatprep.subr.bf16.mxu0 0
    %1512 = vmatpush2.bf16.msra.mxu0 0
    %1513 = vmatprep.subr.bf16.mxu0 0
    %1514 = vmatpush2.bf16.msra.mxu0 0
    %1515 = vmatprep.subr.bf16.mxu0 0
    %1516 = vmatpush2.bf16.msra.mxu0 0
    %1517 = vmatprep.subr.bf16.mxu0 0
    %1518 = vmatpush2.bf16.msra.mxu0 0
    %1519 = vmatprep.subr.bf16.mxu0 0
    %1520 = vmatpush2.bf16.msra.mxu0 0
    %1521 = vmatprep.subr.bf16.mxu0 0
    %1522 = vmatpush2.bf16.msra.mxu0 0
    %1523 = vmatprep.subr.bf16.mxu0 0
    %1524 = vmatpush2.bf16.msra.mxu0 0
    %1525 = vmatprep.mubr.bf16.mxu0 0
    %1526 = vmatmul.mubr.bf16.gmra.mxu0 %v1443
    %v1527 = vpop.f32.mrf.mxu0
    %v1528 = vadd.f32 0.0, %v1527
    %v1529 = vpop.f32.mrf.mxu0
    %v1530 = vpop.f32.mrf.mxu0
    %v1531 = vadd.f32 0.0, %v1530
    %v1532 = vpop.f32.mrf.mxu0
    %1533 = vmatprep.mubr.bf16.mxu0 0
    %1534 = vmatmul.mubr.bf16.gmra.mxu0 %v1444
    %v1535 = vpop.f32.mrf.mxu0
    %v1536 = vadd.f32 0.0, %v1535
    %v1537 = vpop.f32.mrf.mxu0
    %v1538 = vpop.f32.mrf.mxu0
    %v1539 = vadd.f32 0.0, %v1538
    %v1540 = vpop.f32.mrf.mxu0
    %1541 = vdwg.mxu0
    %v1542 = vmax.f32 %v1528, 0.0
    %v1543 = vmax.f32 %v1531, 0.0
    %v1544 = vmax.f32 %v1536, 0.0
    %v1545 = vmax.f32 %v1539, 0.0
    %v1546 = vld [vmem:[%s7] sm:$0xf]
    %v1547 = vld [vmem:[%s7 + $0x4] sm:$0xf]
    %v1548 = vld [vmem:[%s7 + $0x8] sm:$0xf]
    %v1549 = vld [vmem:[%s7 + $0xc] sm:$0xf]
    %v1550 = vld [vmem:[%s7 + $0x10] sm:$0xf]
    %v1551 = vld [vmem:[%s7 + $0x14] sm:$0xf]
    %v1552 = vld [vmem:[%s7 + $0x18] sm:$0xf]
    %v1553 = vld [vmem:[%s7 + $0x1c] sm:$0xf]
    %v1554 = vld [vmem:[%s7 + $0x20] sm:$0xf]
    %v1555 = vld [vmem:[%s7 + $0x24] sm:$0xf]
    %v1556 = vld [vmem:[%s7 + $0x28] sm:$0xf]
    %v1557 = vld [vmem:[%s7 + $0x2c] sm:$0xf]
    %v1558 = vld [vmem:[%s7 + $0x30] sm:$0xf]
    %v1559 = vld [vmem:[%s7 + $0x34] sm:$0xf]
    %v1560 = vld [vmem:[%s7 + $0x38] sm:$0xf]
    %v1561 = vld [vmem:[%s7 + $0x3c] sm:$0xf]
    %v1562 = vpack.c.bf16 %v1543, %v1542
    %v1563 = vpack.c.bf16 %v1545, %v1544
    %v1580 = vunpack.c.l.b16 %v1546
    %v1581 = vunpack.c.l.b16 %v1547
    %v1582 = vunpack.c.l.b16 %v1548
    %v1583 = vunpack.c.l.b16 %v1549
    %v1584 = vunpack.c.l.b16 %v1550
    %v1585 = vunpack.c.l.b16 %v1551
    %v1586 = vunpack.c.l.b16 %v1552
    %v1587 = vunpack.c.l.b16 %v1553
    %v1588 = vunpack.c.l.b16 %v1554
    %v1589 = vunpack.c.l.b16 %v1555
    %v1590 = vunpack.c.l.b16 %v1556
    %v1591 = vunpack.c.l.b16 %v1557
    %v1592 = vunpack.c.l.b16 %v1558
    %v1593 = vunpack.c.l.b16 %v1559
    %v1594 = vunpack.c.l.b16 %v1560
    %v1595 = vunpack.c.l.b16 %v1561
    %v1596 = vpack.c.b16 %v1581, %v1580
    %v1597 = vpack.c.b16 %v1583, %v1582
    %v1598 = vpack.c.b16 %v1585, %v1584
    %v1599 = vpack.c.b16 %v1587, %v1586
    %v1600 = vpack.c.b16 %v1589, %v1588
    %v1601 = vpack.c.b16 %v1591, %v1590
    %v1602 = vpack.c.b16 %v1593, %v1592
    %v1603 = vpack.c.b16 %v1595, %v1594
    %1612 = vmatprep.subr.bf16.mxu0 0
    %1613 = vmatpush1.bf16.msra.mxu0 %v1603
    %1614 = vmatprep.subr.bf16.mxu0 0
    %1615 = vmatpush1.bf16.msra.mxu0 %v1602
    %1616 = vmatprep.subr.bf16.mxu0 0
    %1617 = vmatpush1.bf16.msra.mxu0 %v1601
    %1618 = vmatprep.subr.bf16.mxu0 0
    %1619 = vmatpush1.bf16.msra.mxu0 %v1600
    %1620 = vmatprep.subr.bf16.mxu0 0
    %1621 = vmatpush1.bf16.msra.mxu0 %v1599
    %1622 = vmatprep.subr.bf16.mxu0 0
    %1623 = vmatpush1.bf16.msra.mxu0 %v1598
    %1624 = vmatprep.subr.bf16.mxu0 0
    %1625 = vmatpush1.bf16.msra.mxu0 %v1597
    %1626 = vmatprep.subr.bf16.mxu0 0
    %1627 = vmatpush1.bf16.msra.mxu0 %v1596
    %1628 = vmatprep.subr.bf16.mxu0 0
    %1629 = vmatpush2.bf16.msra.mxu0 0
    %1630 = vmatprep.subr.bf16.mxu0 0
    %1631 = vmatpush2.bf16.msra.mxu0 0
    %1632 = vmatprep.subr.bf16.mxu0 0
    %1633 = vmatpush2.bf16.msra.mxu0 0
    %1634 = vmatprep.subr.bf16.mxu0 0
    %1635 = vmatpush2.bf16.msra.mxu0 0
    %1636 = vmatprep.subr.bf16.mxu0 0
    %1637 = vmatpush2.bf16.msra.mxu0 0
    %1638 = vmatprep.subr.bf16.mxu0 0
    %1639 = vmatpush2.bf16.msra.mxu0 0
    %1640 = vmatprep.subr.bf16.mxu0 0
    %1641 = vmatpush2.bf16.msra.mxu0 0
    %1642 = vmatprep.subr.bf16.mxu0 0
    %1643 = vmatpush2.bf16.msra.mxu0 0
    %1644 = vmatprep.mubr.bf16.mxu0 0
    %1645 = vmatmul.mubr.bf16.gmra.mxu0 %v1562
    %v1646 = vpop.f32.mrf.mxu0
    %v1647 = vadd.f32 0.0, %v1646
    %v1648 = vpop.f32.mrf.mxu0
    %v1649 = vpop.f32.mrf.mxu0
    %v1650 = vadd.f32 0.0, %v1649
    %v1651 = vpop.f32.mrf.mxu0
    %1652 = vmatprep.mubr.bf16.mxu0 0
    %1653 = vmatmul.mubr.bf16.gmra.mxu0 %v1563
    %v1654 = vpop.f32.mrf.mxu0
    %v1655 = vadd.f32 0.0, %v1654
    %v1656 = vpop.f32.mrf.mxu0
    %v1657 = vpop.f32.mrf.mxu0
    %v1658 = vadd.f32 0.0, %v1657
    %v1659 = vpop.f32.mrf.mxu0
    %1660 = vdwg.mxu0
    %v1661 = vadd.f32 %v1419, %v1647
    %v1662 = vadd.f32 %v1420, %v1650
    %v1663 = vadd.f32 %v1421, %v1655
    %v1664 = vadd.f32 %v1422, %v1658
    %v1665 = vpack.c.bf16 %v1662, %v1661
    %v1666 = vpack.c.bf16 %v1664, %v1663
    %1667 = vmatprep.subr.bf16.mxu0 0
    %1668 = vmatpush1.bf16.msra.mxu0 0
    %1669 = vmatprep.subr.bf16.mxu0 0
    %1670 = vmatpush1.bf16.msra.mxu0 0
    %1671 = vmatprep.subr.bf16.mxu0 0
    %1672 = vmatpush1.bf16.msra.mxu0 0
    %1673 = vmatprep.subr.bf16.mxu0 0
    %1674 = vmatpush1.bf16.msra.mxu0 0
    %1675 = vmatprep.subr.bf16.mxu0 0
    %1676 = vmatpush1.bf16.msra.mxu0 0
    %1677 = vmatprep.subr.bf16.mxu0 0
    %1678 = vmatpush1.bf16.msra.mxu0 0
    %1679 = vmatprep.subr.bf16.mxu0 0
    %1680 = vmatpush1.bf16.msra.mxu0 %v1666
    %1681 = vmatprep.subr.bf16.mxu0 0
    %1682 = vmatpush1.bf16.msra.mxu0 %v1665
    %1683 = vmatprep.subr.bf16.mxu0 0
    %1684 = vmatpush2.bf16.msra.mxu0 0
    %1685 = vmatprep.subr.bf16.mxu0 0
    %1686 = vmatpush2.bf16.msra.mxu0 0
    %1687 = vmatprep.subr.bf16.mxu0 0
    %1688 = vmatpush2.bf16.msra.mxu0 0
    %1689 = vmatprep.subr.bf16.mxu0 0
    %1690 = vmatpush2.bf16.msra.mxu0 0
    %1691 = vmatprep.subr.bf16.mxu0 0
    %1692 = vmatpush2.bf16.msra.mxu0 0
    %1693 = vmatprep.subr.bf16.mxu0 0
    %1694 = vmatpush2.bf16.msra.mxu0 0
    %1695 = vmatprep.subr.bf16.mxu0 0
    %1696 = vmatpush2.bf16.msra.mxu0 0
    %1697 = vmatprep.subr.bf16.mxu0 0
    %1698 = vmatpush2.bf16.msra.mxu0 0
    %1699 = vmatprep.mubr.bf16.mxu0 0
    %1700 = vmatmul.mubr.bf16.gmra.mxu0 %v668
    %v1701 = vpop.f32.mrf.mxu0
    %v1702 = vadd.f32 0.0, %v1701
    %v1703 = vpop.f32.mrf.mxu0
    %v1704 = vpop.f32.mrf.mxu0
    %v1705 = vadd.f32 0.0, %v1704
    %v1706 = vpop.f32.mrf.mxu0
    %1707 = vmatprep.mubr.bf16.mxu0 0
    %1708 = vmatmul.mubr.bf16.gmra.mxu0 %v671
    %v1709 = vpop.f32.mrf.mxu0
    %v1710 = vadd.f32 0.0, %v1709
    %v1711 = vpop.f32.mrf.mxu0
    %v1712 = vpop.f32.mrf.mxu0
    %v1713 = vadd.f32 0.0, %v1712
    %v1714 = vpop.f32.mrf.mxu0
    %1715 = vdwg.mxu0
    %v1716 = vsub.f32 %v1661, %v1702
    %v1717 = vsub.f32 %v1662, %v1705
    %v1718 = vsub.f32 %v1663, %v1710
    %v1719 = vsub.f32 %v1664, %v1713
    %v1720 = vadd.f32 %v1423, %v1702
    %v1721 = vadd.f32 %v1424, %v1705
    %v1722 = vadd.f32 %v1425, %v1710
    %v1723 = vadd.f32 %v1426, %v1713
    %v1724 = vrot.slane %v1720, 7
    %v1725 = vrot.slane %v1721, 7
    %v1726 = vlaneseq
    %v1727 = vshrl.u32 %v1726, 7
    %vm1728 = vcmp.lt.s32.totalorder %v1727, 1
    %v1729 = vsel %vm1728, %v1724, %v1725
    %v1730 = vsel %vm1728, %v1725, %v1724
    %v1731 = vrot.slane %v1720, 1
    %v1732 = vrot.slane %v1721, 1
    %vm1733 = vcmp.lt.s32.totalorder %v1727, 7
    %v1734 = vsel %vm1733, %v1731, %v1732
    %v1735 = vsel %vm1733, %v1732, %v1731
    %v1736 = vrot.slane %v1722, 7
    %v1737 = vrot.slane %v1723, 7
    %v1738 = vsel %vm1728, %v1736, %v1737
    %v1739 = vsel %vm1728, %v1737, %v1736
    %v1740 = vrot.slane %v1722, 1
    %v1741 = vrot.slane %v1723, 1
    %v1742 = vsel %vm1733, %v1740, %v1741
    %v1743 = vsel %vm1733, %v1741, %v1740
    %v1744 = vpack.c.bf16 %v1729, %v1730
    %v1745 = vpack.c.bf16 %v1721, %v1720
    %v1746 = vpack.c.bf16 %v1735, %v1734
    %v1747 = vpack.c.bf16 %v1738, %v1739
    %v1748 = vpack.c.bf16 %v1723, %v1722
    %v1749 = vpack.c.bf16 %v1743, %v1742
    %v1750 = vld [vmem:[%s8] sm:$0xf]
    %v1751 = vld [vmem:[%s8 + $0x4] sm:$0xf]
    %v1752 = vld [vmem:[%s8 + $0x8] sm:$0xf]
    %v1753 = vld [vmem:[%s8 + $0xc] sm:$0xf]
    %v1754 = vld [vmem:[%s8 + $0x10] sm:$0xf]
    %v1755 = vld [vmem:[%s8 + $0x14] sm:$0xf]
    %v1756 = vld [vmem:[%s8 + $0x18] sm:$0xf]
    %v1757 = vld [vmem:[%s8 + $0x1c] sm:$0xf]
    %v1758 = vld [vmem:[%s8 + $0x20] sm:$0xf]
    %v1759 = vld [vmem:[%s8 + $0x24] sm:$0xf]
    %v1760 = vld [vmem:[%s8 + $0x28] sm:$0xf]
    %v1761 = vld [vmem:[%s8 + $0x2c] sm:$0xf]
    %v1762 = vld [vmem:[%s8 + $0x30] sm:$0xf]
    %v1763 = vld [vmem:[%s8 + $0x34] sm:$0xf]
    %v1764 = vld [vmem:[%s8 + $0x38] sm:$0xf]
    %v1765 = vld [vmem:[%s8 + $0x3c] sm:$0xf]
    %v1766 = vld [vmem:[%s8 + $0x40] sm:$0xf]
    %v1767 = vld [vmem:[%s8 + $0x44] sm:$0xf]
    %v1768 = vld [vmem:[%s8 + $0x48] sm:$0xf]
    %v1769 = vld [vmem:[%s8 + $0x4c] sm:$0xf]
    %v1770 = vld [vmem:[%s8 + $0x50] sm:$0xf]
    %v1771 = vld [vmem:[%s8 + $0x54] sm:$0xf]
    %v1772 = vld [vmem:[%s8 + $0x58] sm:$0xf]
    %v1773 = vld [vmem:[%s8 + $0x5c] sm:$0xf]
    %v1774 = vld [vmem:[%s8 + $0x60] sm:$0xf]
    %v1775 = vld [vmem:[%s8 + $0x64] sm:$0xf]
    %v1776 = vld [vmem:[%s8 + $0x68] sm:$0xf]
    %v1777 = vld [vmem:[%s8 + $0x6c] sm:$0xf]
    %v1778 = vld [vmem:[%s8 + $0x70] sm:$0xf]
    %v1779 = vld [vmem:[%s8 + $0x74] sm:$0xf]
    %v1780 = vld [vmem:[%s8 + $0x78] sm:$0xf]
    %v1781 = vld [vmem:[%s8 + $0x7c] sm:$0xf]
    %v1782 = vld [vmem:[%s8 + $0x80] sm:$0xf]
    %v1783 = vld [vmem:[%s8 + $0x84] sm:$0xf]
    %v1784 = vld [vmem:[%s8 + $0x88] sm:$0xf]
    %v1785 = vld [vmem:[%s8 + $0x8c] sm:$0xf]
    %v1786 = vld [vmem:[%s8 + $0x90] sm:$0xf]
    %v1787 = vld [vmem:[%s8 + $0x94] sm:$0xf]
    %v1788 = vld [vmem:[%s8 + $0x98] sm:$0xf]
    %v1789 = vld [vmem:[%s8 + $0x9c] sm:$0xf]
    %v1790 = vld [vmem:[%s8 + $0xa0] sm:$0xf]
    %v1791 = vld [vmem:[%s8 + $0xa4] sm:$0xf]
    %v1792 = vld [vmem:[%s8 + $0xa8] sm:$0xf]
    %v1793 = vld [vmem:[%s8 + $0xac] sm:$0xf]
    %v1794 = vld [vmem:[%s8 + $0xb0] sm:$0xf]
    %v1795 = vld [vmem:[%s8 + $0xb4] sm:$0xf]
    %v1796 = vld [vmem:[%s8 + $0xb8] sm:$0xf]
    %v1797 = vld [vmem:[%s8 + $0xbc] sm:$0xf]
    %v1846 = vunpack.c.l.b16 %v1750
    %v1847 = vunpack.c.l.b16 %v1751
    %v1848 = vunpack.c.l.b16 %v1752
    %v1849 = vunpack.c.l.b16 %v1753
    %v1850 = vunpack.c.l.b16 %v1754
    %v1851 = vunpack.c.l.b16 %v1755
    %v1852 = vunpack.c.l.b16 %v1756
    %v1853 = vunpack.c.l.b16 %v1757
    %v1854 = vunpack.c.l.b16 %v1758
    %v1855 = vunpack.c.l.b16 %v1759
    %v1856 = vunpack.c.l.b16 %v1760
    %v1857 = vunpack.c.l.b16 %v1761
    %v1858 = vunpack.c.l.b16 %v1762
    %v1859 = vunpack.c.l.b16 %v1763
    %v1860 = vunpack.c.l.b16 %v1764
    %v1861 = vunpack.c.l.b16 %v1765
    %v1862 = vunpack.c.l.b16 %v1766
    %v1863 = vunpack.c.l.b16 %v1767
    %v1864 = vunpack.c.l.b16 %v1768
    %v1865 = vunpack.c.l.b16 %v1769
    %v1866 = vunpack.c.l.b16 %v1770
    %v1867 = vunpack.c.l.b16 %v1771
    %v1868 = vunpack.c.l.b16 %v1772
    %v1869 = vunpack.c.l.b16 %v1773
    %v1870 = vunpack.c.l.b16 %v1774
    %v1871 = vunpack.c.l.b16 %v1775
    %v1872 = vunpack.c.l.b16 %v1776
    %v1873 = vunpack.c.l.b16 %v1777
    %v1874 = vunpack.c.l.b16 %v1778
    %v1875 = vunpack.c.l.b16 %v1779
    %v1876 = vunpack.c.l.b16 %v1780
    %v1877 = vunpack.c.l.b16 %v1781
    %v1878 = vunpack.c.l.b16 %v1782
    %v1879 = vunpack.c.l.b16 %v1783
    %v1880 = vunpack.c.l.b16 %v1784
    %v1881 = vunpack.c.l.b16 %v1785
    %v1882 = vunpack.c.l.b16 %v1786
    %v1883 = vunpack.c.l.b16 %v1787
    %v1884 = vunpack.c.l.b16 %v1788
    %v1885 = vunpack.c.l.b16 %v1789
    %v1886 = vunpack.c.l.b16 %v1790
    %v1887 = vunpack.c.l.b16 %v1791
    %v1888 = vunpack.c.l.b16 %v1792
    %v1889 = vunpack.c.l.b16 %v1793
    %v1890 = vunpack.c.l.b16 %v1794
    %v1891 = vunpack.c.l.b16 %v1795
    %v1892 = vunpack.c.l.b16 %v1796
    %v1893 = vunpack.c.l.b16 %v1797
    %v1894 = vpack.c.b16 %v1847, %v1846
    %v1895 = vpack.c.b16 %v1849, %v1848
    %v1896 = vpack.c.b16 %v1851, %v1850
    %v1897 = vpack.c.b16 %v1853, %v1852
    %v1898 = vpack.c.b16 %v1855, %v1854
    %v1899 = vpack.c.b16 %v1857, %v1856
    %v1900 = vpack.c.b16 %v1859, %v1858
    %v1901 = vpack.c.b16 %v1861, %v1860
    %v1902 = vpack.c.b16 %v1863, %v1862
    %v1903 = vpack.c.b16 %v1865, %v1864
    %v1904 = vpack.c.b16 %v1867, %v1866
    %v1905 = vpack.c.b16 %v1869, %v1868
    %v1906 = vpack.c.b16 %v1871, %v1870
    %v1907 = vpack.c.b16 %v1873, %v1872
    %v1908 = vpack.c.b16 %v1875, %v1874
    %v1909 = vpack.c.b16 %v1877, %v1876
    %v1910 = vpack.c.b16 %v1879, %v1878
    %v1911 = vpack.c.b16 %v1881, %v1880
    %v1912 = vpack.c.b16 %v1883, %v1882
    %v1913 = vpack.c.b16 %v1885, %v1884
    %v1914 = vpack.c.b16 %v1887, %v1886
    %v1915 = vpack.c.b16 %v1889, %v1888
    %v1916 = vpack.c.b16 %v1891, %v1890
    %v1917 = vpack.c.b16 %v1893, %v1892
    %1942 = vmatprep.subr.bf16.mxu0 0
    %1943 = vmatpush1.bf16.msra.mxu0 %v1901
    %1944 = vmatprep.subr.bf16.mxu0 0
    %1945 = vmatpush1.bf16.msra.mxu0 %v1900
    %1946 = vmatprep.subr.bf16.mxu0 0
    %1947 = vmatpush1.bf16.msra.mxu0 %v1899
    %1948 = vmatprep.subr.bf16.mxu0 0
    %1949 = vmatpush1.bf16.msra.mxu0 %v1898
    %1950 = vmatprep.subr.bf16.mxu0 0
    %1951 = vmatpush1.bf16.msra.mxu0 %v1897
    %1952 = vmatprep.subr.bf16.mxu0 0
    %1953 = vmatpush1.bf16.msra.mxu0 %v1896
    %1954 = vmatprep.subr.bf16.mxu0 0
    %1955 = vmatpush1.bf16.msra.mxu0 %v1895
    %1956 = vmatprep.subr.bf16.mxu0 0
    %1957 = vmatpush1.bf16.msra.mxu0 %v1894
    %1958 = vmatprep.subr.bf16.mxu0 0
    %1959 = vmatpush2.bf16.msra.mxu0 %v1909
    %1960 = vmatprep.subr.bf16.mxu0 0
    %1961 = vmatpush2.bf16.msra.mxu0 %v1908
    %1962 = vmatprep.subr.bf16.mxu0 0
    %1963 = vmatpush2.bf16.msra.mxu0 %v1907
    %1964 = vmatprep.subr.bf16.mxu0 0
    %1965 = vmatpush2.bf16.msra.mxu0 %v1906
    %1966 = vmatprep.subr.bf16.mxu0 0
    %1967 = vmatpush2.bf16.msra.mxu0 %v1905
    %1968 = vmatprep.subr.bf16.mxu0 0
    %1969 = vmatpush2.bf16.msra.mxu0 %v1904
    %1970 = vmatprep.subr.bf16.mxu0 0
    %1971 = vmatpush2.bf16.msra.mxu0 %v1903
    %1972 = vmatprep.subr.bf16.mxu0 0
    %1973 = vmatpush2.bf16.msra.mxu0 %v1902
    %1974 = vmatprep.mubr.bf16.mxu0 %v1745
    %1975 = vmatmul.mubr.bf16.gmra.mxu0 %v1744
    %v1976 = vpop.f32.mrf.mxu0
    %v1977 = vadd.f32 0.0, %v1976
    %v1978 = vpop.f32.mrf.mxu0
    %v1979 = vpop.f32.mrf.mxu0
    %v1980 = vadd.f32 0.0, %v1979
    %v1981 = vpop.f32.mrf.mxu0
    %1982 = vmatprep.mubr.bf16.mxu0 %v1748
    %1983 = vmatmul.mubr.bf16.gmra.mxu0 %v1747
    %v1984 = vpop.f32.mrf.mxu0
    %v1985 = vadd.f32 0.0, %v1984
    %v1986 = vpop.f32.mrf.mxu0
    %v1987 = vpop.f32.mrf.mxu0
    %v1988 = vadd.f32 0.0, %v1987
    %v1989 = vpop.f32.mrf.mxu0
    %1990 = vdwg.mxu0
    %1991 = vmatprep.subr.bf16.mxu0 0
    %1992 = vmatpush1.bf16.msra.mxu0 %v1917
    %1993 = vmatprep.subr.bf16.mxu0 0
    %1994 = vmatpush1.bf16.msra.mxu0 %v1916
    %1995 = vmatprep.subr.bf16.mxu0 0
    %1996 = vmatpush1.bf16.msra.mxu0 %v1915
    %1997 = vmatprep.subr.bf16.mxu0 0
    %1998 = vmatpush1.bf16.msra.mxu0 %v1914
    %1999 = vmatprep.subr.bf16.mxu0 0
    %2000 = vmatpush1.bf16.msra.mxu0 %v1913
    %2001 = vmatprep.subr.bf16.mxu0 0
    %2002 = vmatpush1.bf16.msra.mxu0 %v1912
    %2003 = vmatprep.subr.bf16.mxu0 0
    %2004 = vmatpush1.bf16.msra.mxu0 %v1911
    %2005 = vmatprep.subr.bf16.mxu0 0
    %2006 = vmatpush1.bf16.msra.mxu0 %v1910
    %2007 = vmatprep.subr.bf16.mxu0 0
    %2008 = vmatpush2.bf16.msra.mxu0 0
    %2009 = vmatprep.subr.bf16.mxu0 0
    %2010 = vmatpush2.bf16.msra.mxu0 0
    %2011 = vmatprep.subr.bf16.mxu0 0
    %2012 = vmatpush2.bf16.msra.mxu0 0
    %2013 = vmatprep.subr.bf16.mxu0 0
    %2014 = vmatpush2.bf16.msra.mxu0 0
    %2015 = vmatprep.subr.bf16.mxu0 0
    %2016 = vmatpush2.bf16.msra.mxu0 0
    %2017 = vmatprep.subr.bf16.mxu0 0
    %2018 = vmatpush2.bf16.msra.mxu0 0
    %2019 = vmatprep.subr.bf16.mxu0 0
    %2020 = vmatpush2.bf16.msra.mxu0 0
    %2021 = vmatprep.subr.bf16.mxu0 0
    %2022 = vmatpush2.bf16.msra.mxu0 0
    %2023 = vmatprep.mubr.bf16.mxu0 0
    %2024 = vmatmul.mubr.bf16.gmra.mxu0 %v1746
    %v2025 = vpop.f32.mrf.mxu0
    %v2026 = vadd.f32 %v1977, %v2025
    %v2027 = vpop.f32.mrf.mxu0
    %v2028 = vpop.f32.mrf.mxu0
    %v2029 = vadd.f32 %v1980, %v2028
    %v2030 = vpop.f32.mrf.mxu0
    %2031 = vmatprep.mubr.bf16.mxu0 0
    %2032 = vmatmul.mubr.bf16.gmra.mxu0 %v1749
    %v2033 = vpop.f32.mrf.mxu0
    %v2034 = vadd.f32 %v1985, %v2033
    %v2035 = vpop.f32.mrf.mxu0
    %v2036 = vpop.f32.mrf.mxu0
    %v2037 = vadd.f32 %v1988, %v2036
    %v2038 = vpop.f32.mrf.mxu0
    %2039 = vdwg.mxu0
    %2040 = vst [vmem:[#allocation2] sm:$0xff] %v1716
    %2041 = vst [vmem:[#allocation2 + $0x8] sm:$0xff] %v1717
    %2042 = vst [vmem:[#allocation2 + $0x10] sm:$0xff] %v1718
    %2043 = vst [vmem:[#allocation2 + $0x18] sm:$0xff] %v1719
    %2044 = vst [vmem:[%s10] sm:$0xff] %v2026
    %2045 = vst [vmem:[%s10 + $0x8] sm:$0xff] %v2029
    %2046 = vst [vmem:[%s10 + $0x10] sm:$0xff] %v2034
    %2047 = vst [vmem:[%s10 + $0x18] sm:$0xff] %v2037
    // Predicated region
    $region38: #{decoder_layer_forward.1} parent=1 // pred_check
      _
    $region39: #{decoder_layer_forward.1} parent=1 // pred_check_branch
      %2049 = sbr.rel (0) target = $region41
    $region40: #{decoder_layer_forward.1} parent=1 // pred_region
      %s2051 = ssub.s32 512, 512
      %2052 = vsyncadd [#allocation3], %s2051
      %s2053 = sshll.u32 [#allocation2], 4
      %s2054 = int_to_ptr.vmem [resolvable:$true] %s2053
      %2059 = dma.vmem_to_hbm [thread:$0]  %s2054, 512, %s9, [#allocation3], 128, 128, 8
    $region41: #{decoder_layer_forward.1} parent=1 // pred_fallthru
      _
    // Predicated region
    $region42: #{decoder_layer_forward.1} parent=1 // pred_check
      _
    $region43: #{decoder_layer_forward.1} parent=1 // pred_check_branch
      %2061 = sbr.rel (0) target = $region45
    $region44: #{decoder_layer_forward.1} parent=1 // pred_region
      _
    $region45: #{decoder_layer_forward.1} parent=1 // pred_fallthru
      _
    // Predicated region
    $region46: #{decoder_layer_forward.1} parent=1 // pred_check
      _
    $region47: #{decoder_layer_forward.1} parent=1 // pred_check_branch
      %2063 = sbr.rel (0) target = $region49
    $region48: #{decoder_layer_forward.1} parent=1 // pred_region
      %2064 = dma.done [#allocation3], 512
    $region49: #{decoder_layer_forward.1} parent=1 // pred_fallthru
      _
    // Predicated region
    $region50: #{decoder_layer_forward.1} parent=1 // pred_check
      _
    $region51: #{decoder_layer_forward.1} parent=1 // pred_check_branch
      %2066 = sbr.rel (0) target = $region53
    $region52: #{decoder_layer_forward.1} parent=1 // pred_region
      _
    $region53: #{decoder_layer_forward.1} parent=1 // pred_fallthru
      _
    %2067 = vsyncpa [#allocation3], 1

</llo_original>
